<compile_context>
chip_gen: v7x
topology: tpu7x:2x2x1
jax: 0.10.0
libtpu: 0.0.40
codegen_flags: <defaults>
</compile_context>

<pallas_src>
import functools
import numpy as np
import jax
import jax.numpy as jnp
from jax import lax
from jax.experimental import pallas as pl
from jax.experimental.pallas import tpu as pltpu

# ---- scaled-down hyper-parameters (original values in comments) ----
ENC_DIM    = 32    # 2048  (encoder feature dim)
EMBED_DIM  = 32    # 512   (decoder embed dim)
QKV_DIM    = 16    # 64
N_HEADS    = 4     # 8
D_FF_ENC   = 64    # 4096
D_FF_DEC   = 64    # 2048
NUM_PIX    = 16    # 196   (4x4 spatial grid instead of 14x14)
GRID_W     = 4     # 14
MAX_LEN    = 8     # 52    (max_decode_length)
VOCAB      = 20
ENC_LAYERS = 1
DEC_LAYERS = 1

LN_EPS = 1e-5


# ----------------------------- helpers -----------------------------

def _pick_batch_block(B):
    """Batch elements folded into one MHA grid step (bigger matmul M) while
    keeping a 'parallel' grid extent >= 2 so v7x can shard over both TCs."""
    if B >= 4 and B % 2 == 0:
        return B // 2
    return 1


def _pick_m_tile(M):
    """Largest M tile <= 256 that divides M, is a multiple of 8 and leaves a
    grid extent >= 2 (megacore); otherwise the whole extent in one block."""
    for tm in (256, 128, 64, 32, 16, 8):
        if M % tm == 0 and M // tm >= 2:
            return tm
    return M


def _layernorm(y):
    """LayerNorm over last dim, gamma=1 beta=0 (fresh nn.LayerNorm each call in
    the reference).  Single-pass variance: E[x^2] - mean^2."""
    mean = jnp.mean(y, axis=-1, keepdims=True)
    mean_sq = jnp.mean(y * y, axis=-1, keepdims=True)
    var = mean_sq - mean * mean
    return (y - mean) * lax.rsqrt(var + LN_EPS)


# ----------------------------- Pallas kernels -----------------------------

def _mha_kernel(*refs, n_heads, d, bb, masked, self_kv):
    """Fused multi-head attention block for `bb` batch elements.

    inputs : x_q [bb, Lq, q_dim] bf16, (x_kv [bb, Lk, k_dim] bf16 unless self_kv),
             (pad_k [bb, 1, Lk] i32 if masked),
             W_Q [q_dim, H*D] bf16 (1/sqrt(D) pre-folded), b_Q [1, H*D] f32,
             W_KV [k_dim, 2*H*D] bf16, b_KV [1, 2*H*D] f32,
             W_O [H, D, q_dim] bf16, b_O [1, q_dim] f32
    outputs: out [bb, Lq, q_dim] bf16, attn [bb, H, Lq, Lk] f32
    """
    idx = 0
    xq_ref = refs[idx]; idx += 1
    if self_kv:
        xkv_ref = xq_ref
    else:
        xkv_ref = refs[idx]; idx += 1
    if masked:
        pad_ref = refs[idx]; idx += 1
    else:
        pad_ref = None
    (wq_ref, bq_ref, wkv_ref, bkv_ref, wo_ref, bo_ref, out_ref, attn_ref) = refs[idx:]

    hd = n_heads * d
    Lq, q_dim = xq_ref.shape[1], xq_ref.shape[2]
    Lk, k_dim = xkv_ref.shape[1], xkv_ref.shape[2]

    xq = xq_ref[...]                                   # [bb, Lq, q_dim] bf16
    xq2 = xq.reshape(bb * Lq, q_dim)                   # batch folded into matmul M
    if self_kv:
        xkv2 = xq2
    else:
        xkv2 = xkv_ref[...].reshape(bb * Lk, k_dim)

    # fused Q and (K|V) projections, bf16 MXU inputs, f32 accumulation.
    # 1/sqrt(D) already folded into W_Q / b_Q at init.
    qp = jnp.dot(xq2, wq_ref[...],
                 preferred_element_type=jnp.float32) + bq_ref[...]       # [bb*Lq, H*D]
    kvp = jnp.dot(xkv2, wkv_ref[...],
                  preferred_element_type=jnp.float32) + bkv_ref[...]     # [bb*Lk, 2*H*D]

    if masked:
        rows = lax.broadcasted_iota(jnp.int32, (Lq, Lk), 0)
        cols = lax.broadcasted_iota(jnp.int32, (Lq, Lk), 1)
        causal = cols > rows                            # subsequent (upper-tri) mask

    for b in range(bb):                                 # static, small batch-block loop
        qp_b = qp[b * Lq:(b + 1) * Lq, :]
        kp_b = kvp[b * Lk:(b + 1) * Lk, :hd]
        vp_b = kvp[b * Lk:(b + 1) * Lk, hd:]

        # Per-head score dots (Mosaic would unroll a head-batched dot_general the
        # same way); everything downstream is done once on [H, Lq, Lk].
        s_list = []
        for h in range(n_heads):
            q_h = qp_b[:, h * d:(h + 1) * d].astype(jnp.bfloat16)        # [Lq, D]
            k_h = kp_b[:, h * d:(h + 1) * d].astype(jnp.bfloat16)        # [Lk, D]
            s_list.append(lax.dot_general(q_h, k_h, (((1,), (1,)), ((), ())),
                                          preferred_element_type=jnp.float32))
        s = jnp.stack(s_list, axis=0)                   # [H, Lq, Lk] f32

        if masked:
            pad_b = pad_ref[b] != 0                     # [1, Lk] (key token == PAD)
            bias = jnp.where(causal | pad_b,
                             jnp.float32(-1e9), jnp.float32(0.0))        # [Lq, Lk]
            s = s + bias[None]                          # one additive bias, all heads

        # f32 softmax; reciprocal on the EUP slot.
        mx = jnp.max(s, axis=-1, keepdims=True)
        e = jnp.exp(s - mx)
        a = e * pl.reciprocal(jnp.sum(e, axis=-1, keepdims=True), approx=True)
        attn_ref[b] = a                                 # one [H, Lq, Lk] store

        # Context + output projection accumulated per head (no concatenate).
        out_b = jnp.zeros((Lq, q_dim), jnp.float32)
        for h in range(n_heads):
            a_h = a[h].astype(jnp.bfloat16)                              # [Lq, Lk]
            v_h = vp_b[:, h * d:(h + 1) * d].astype(jnp.bfloat16)        # [Lk, D]
            ctx_h = jnp.dot(a_h, v_h, preferred_element_type=jnp.float32)
            out_b = out_b + jnp.dot(ctx_h.astype(jnp.bfloat16), wo_ref[h],
                                    preferred_element_type=jnp.float32)  # [Lq, q_dim]
        out_b = out_b + bo_ref[...]
        # dropout: eval-mode identity
        resid = xq[b].astype(jnp.float32)
        out_ref[b] = _layernorm(out_b + resid).astype(out_ref.dtype)


def _ffn_kernel(x_ref, w1_ref, b1_ref, w2_ref, b2_ref, out_ref):
    """conv1(k=1)+ReLU -> conv2(k=1) -> residual-add + LayerNorm, one M tile."""
    x = x_ref[...]                                                        # [tm, E] bf16
    h = jnp.dot(x, w1_ref[...], preferred_element_type=jnp.float32) + b1_ref[...]
    h = jnp.maximum(h, 0.0)
    o = jnp.dot(h.astype(jnp.bfloat16), w2_ref[...],
                preferred_element_type=jnp.float32) + b2_ref[...]
    # dropout: eval-mode identity
    out_ref[...] = _layernorm(o + x.astype(jnp.float32)).astype(out_ref.dtype)


def _linear_kernel(x_ref, w_ref, b_ref, o_ref):
    o_ref[...] = jnp.dot(x_ref[...], w_ref[...],
                         preferred_element_type=jnp.float32) + b_ref[...]


# ----------------------------- kernel wrappers -----------------------------

def fused_mha(params, x_q, x_kv=None, pad_k=None):
    """Full Multi_Head_Attention block (proj -> SDPA -> proj -> add&LN).

    x_q:   [B, Lq, q_dim] bf16 (also the residual)
    x_kv:  [B, Lk, k_dim] bf16, or None for self-attention (x_kv == x_q, DMA'd once)
    pad_k: [B, 1, Lk] int32 (1 = key token is PAD) or None; the causal mask is
           generated in-kernel, so no [B, Lq, Lk] mask ever touches HBM.
    returns (out [B, Lq, q_dim] bf16, attn [B, H, Lq, Lk] f32)
    """
    B, Lq, q_dim = x_q.shape
    self_kv = x_kv is None
    if self_kv:
        Lk, k_dim = Lq, q_dim
    else:
        Lk, k_dim = x_kv.shape[1], x_kv.shape[2]
    H, D = N_HEADS, QKV_DIM
    masked = pad_k is not None
    bb = _pick_batch_block(B)

    args = [x_q]
    in_specs = [pl.BlockSpec((bb, Lq, q_dim), lambda i: (i, 0, 0))]
    if not self_kv:
        args.append(x_kv)
        in_specs.append(pl.BlockSpec((bb, Lk, k_dim), lambda i: (i, 0, 0)))
    if masked:
        args.append(pad_k)
        in_specs.append(pl.BlockSpec((bb, 1, Lk), lambda i: (i, 0, 0)))
    # replicated weights (index_map constant across the grid)
    # TODO(synk): on v7x, single-buffer these via pipeline_mode=pl.Buffered(1).
    args += [params['W_Q'], params['b_Q'], params['W_KV'], params['b_KV'],
             params['W_O'], params['b_O']]
    in_specs += [
        pl.BlockSpec(params['W_Q'].shape, lambda i: (0, 0)),
        pl.BlockSpec(params['b_Q'].shape, lambda i: (0, 0)),
        pl.BlockSpec(params['W_KV'].shape, lambda i: (0, 0)),
        pl.BlockSpec(params['b_KV'].shape, lambda i: (0, 0)),
        pl.BlockSpec(params['W_O'].shape, lambda i: (0, 0, 0)),
        pl.BlockSpec(params['b_O'].shape, lambda i: (0, 0)),
    ]

    out, attn = pl.pallas_call(
        functools.partial(_mha_kernel, n_heads=H, d=D, bb=bb,
                          masked=masked, self_kv=self_kv),
        grid=(B // bb,),
        in_specs=in_specs,
        out_specs=[
            pl.BlockSpec((bb, Lq, q_dim), lambda i: (i, 0, 0)),
            pl.BlockSpec((bb, H, Lq, Lk), lambda i: (i, 0, 0, 0)),
        ],
        out_shape=[
            jax.ShapeDtypeStruct((B, Lq, q_dim), jnp.bfloat16),
            jax.ShapeDtypeStruct((B, H, Lq, Lk), jnp.float32),
        ],
        compiler_params=pltpu.CompilerParams(
            dimension_semantics=("parallel",)),
    )(*args)
    return out, attn


def pos_ffn(params, x):
    """PoswiseFeedForwardNet (+ residual & LayerNorm), tiled over M = B*L."""
    B, L, E = x.shape
    M = B * L
    x2 = x.reshape(M, E)
    tm = _pick_m_tile(M)
    out = pl.pallas_call(
        _ffn_kernel,
        grid=(M // tm,),
        in_specs=[pl.BlockSpec((tm, E), lambda i: (i, 0)),
                  pl.BlockSpec(params['W1'].shape, lambda i: (0, 0)),
                  pl.BlockSpec(params['b1'].shape, lambda i: (0, 0)),
                  pl.BlockSpec(params['W2'].shape, lambda i: (0, 0)),
                  pl.BlockSpec(params['b2'].shape, lambda i: (0, 0))],
        out_specs=pl.BlockSpec((tm, E), lambda i: (i, 0)),
        out_shape=jax.ShapeDtypeStruct((M, E), jnp.bfloat16),
        compiler_params=pltpu.CompilerParams(
            dimension_semantics=("parallel",)),
    )(x2, params['W1'], params['b1'], params['W2'], params['b2'])
    return out.reshape(B, L, E)


def linear(x2d, w, b):
    """x2d: [M, K] bf16 @ w: [K, N] bf16 + b: [1, N] f32 -> [M, N] f32, M-tiled."""
    M, K = x2d.shape
    N = w.shape[1]
    tm = _pick_m_tile(M)
    return pl.pallas_call(
        _linear_kernel,
        grid=(M // tm,),
        in_specs=[pl.BlockSpec((tm, K), lambda i: (i, 0)),
                  pl.BlockSpec(w.shape, lambda i: (0, 0)),
                  pl.BlockSpec(b.shape, lambda i: (0, 0))],
        out_specs=pl.BlockSpec((tm, N), lambda i: (i, 0)),
        out_shape=jax.ShapeDtypeStruct((M, N), jnp.float32),
        compiler_params=pltpu.CompilerParams(
            dimension_semantics=("parallel",)),
    )(x2d, w, b)


# ----------------------------- model forward -----------------------------

def encoder_forward(params, enc_out):
    enc_out = (enc_out + params['enc_pos'][None]).astype(jnp.bfloat16)
    attns = []
    for lp in params['enc_layers']:
        # encoder self-attention mask is statically all-False -> unmasked variant
        enc_out, a = fused_mha(lp['self_attn'], enc_out)
        enc_out = pos_ffn(lp['ffn'], enc_out)
        attns.append(a)
    return enc_out, attns


def decoder_forward(params, encoder_out, encoded_captions, caption_lengths):
    lengths = caption_lengths[:, 0]
    sort_ind = jnp.argsort(-lengths)              # descending sort
    lengths_sorted = lengths[sort_ind]
    encoder_out = encoder_out[sort_ind]
    encoded_captions = encoded_captions[sort_ind]
    decode_lengths = lengths_sorted - 1

    dec_out = (params['tgt_emb'][encoded_captions]
               + params['dec_pos'][None, :, :]).astype(jnp.bfloat16)
    # dropout: eval-mode identity

    # Only a per-key pad indicator goes to the kernel; pad+causal mask is built
    # in-kernel from this row + broadcasted_iota (no [B, L, L] HBM tensor).
    pad_k = (encoded_captions == 0).astype(jnp.int32)[:, None, :]   # [B, 1, L]

    dec_self_attns, dec_enc_attns = [], []
    for lp in params['dec_layers']:
        dec_out, sa = fused_mha(lp['self_attn'], dec_out, pad_k=pad_k)
        # decoder cross-attention mask is statically all-False -> unmasked variant
        dec_out, ea = fused_mha(lp['enc_attn'], dec_out, x_kv=encoder_out)
        dec_out = pos_ffn(lp['ffn'], dec_out)
        dec_self_attns.append(sa)
        dec_enc_attns.append(ea)

    B2, L, E = dec_out.shape
    predictions = linear(dec_out.reshape(B2 * L, E),
                         params['projection_W'],
                         params['projection_b']).reshape(B2, L, VOCAB)
    return (predictions, encoded_captions, decode_lengths, sort_ind,
            dec_self_attns, dec_enc_attns)


def transformer_forward(params, enc_inputs, encoded_captions, caption_lengths):
    B = enc_inputs.shape[0]
    enc_inputs = enc_inputs.reshape(B, -1, enc_inputs.shape[-1])
    encoder_out, enc_self_attns = encoder_forward(params, enc_inputs)
    (predictions, encoded_captions, decode_lengths, sort_ind,
     dec_self_attns, dec_enc_attns) = decoder_forward(params, encoder_out,
                                                      encoded_captions,
                                                      caption_lengths)
    alphas = {'enc_self_attns': enc_self_attns,
              'dec_self_attns': dec_self_attns,
              'dec_enc_attns': dec_enc_attns}
    return predictions, encoded_captions, decode_lengths, alphas, sort_ind


# ----------------------------- parameter init -----------------------------

def init_linear_params(key, in_dim, out_dim, bias=True):
    kw, kb = jax.random.split(key)
    bound = 1.0 / np.sqrt(in_dim)
    w = jax.random.uniform(kw, (in_dim, out_dim), jnp.float32, -bound, bound)
    if bias:
        b = jax.random.uniform(kb, (1, out_dim), jnp.float32, -bound, bound)
    else:
        b = jnp.zeros((1, out_dim), jnp.float32)
    return w, b


def init_mha(key, q_dim, k_dim, qkv_dim, n_heads):
    ks = jax.random.split(key, 4)
    hd = qkv_dim * n_heads
    wq, bq = init_linear_params(ks[0], q_dim, hd)
    wk, bk = init_linear_params(ks[1], k_dim, hd)
    wv, bv = init_linear_params(ks[2], k_dim, hd)
    wo, bo = init_linear_params(ks[3], hd, q_dim)
    scale = 1.0 / float(np.sqrt(qkv_dim))          # fold 1/sqrt(D) into Q projection
    return {
        'W_Q': (wq * scale).astype(jnp.bfloat16), 'b_Q': bq * scale,
        'W_KV': jnp.concatenate([wk, wv], axis=1).astype(jnp.bfloat16),
        'b_KV': jnp.concatenate([bk, bv], axis=1),
        'W_O': wo.reshape(n_heads, qkv_dim, q_dim).astype(jnp.bfloat16),
        'b_O': bo,
    }


def init_ffn(key, embed_dim, d_ff):
    k1, k2 = jax.random.split(key)
    w1, b1 = init_linear_params(k1, embed_dim, d_ff)
    w2, b2 = init_linear_params(k2, d_ff, embed_dim)
    return {'W1': w1.astype(jnp.bfloat16), 'b1': b1,
            'W2': w2.astype(jnp.bfloat16), 'b2': b2}


def enc_position_table(num_pixels, enc_dim, grid_w):
    half = enc_dim // 2
    tab = np.zeros((num_pixels, enc_dim), np.float32)
    for pos in range(num_pixels):
        x, y = pos % grid_w, pos // grid_w
        for i in range(half):
            tab[pos, i] = np.sin(x / np.power(10000, i / half))
            tab[pos, half + i] = np.sin(y / np.power(10000, i / half))
    return jnp.asarray(tab)


def dec_position_table(max_len, embed_dim):
    tab = np.array([[pos / np.power(10000, 2 * (i // 2) / embed_dim)
                     for i in range(embed_dim)] for pos in range(max_len)])
    tab[:, 0::2] = np.sin(tab[:, 0::2])
    tab[:, 1::2] = np.cos(tab[:, 1::2])
    return jnp.asarray(tab.astype(np.float32))


def init_transformer(key):
    params = {}
    k_emb, k_enc, k_dec, k_proj = jax.random.split(key, 4)

    # nn.Embedding default N(0,1); padding_idx=0 row zeroed
    tgt = jax.random.normal(k_emb, (VOCAB, EMBED_DIM), jnp.float32)
    params['tgt_emb'] = tgt.at[0].set(0.0)
    params['dec_pos'] = dec_position_table(MAX_LEN, EMBED_DIM)
    params['enc_pos'] = enc_position_table(NUM_PIX, ENC_DIM, GRID_W)

    enc_layers = []
    for k in jax.random.split(k_enc, ENC_LAYERS):
        ka, kf = jax.random.split(k)
        enc_layers.append({'self_attn': init_mha(ka, ENC_DIM, ENC_DIM, QKV_DIM, N_HEADS),
                           'ffn': init_ffn(kf, ENC_DIM, D_FF_ENC)})
    params['enc_layers'] = enc_layers

    dec_layers = []
    for k in jax.random.split(k_dec, DEC_LAYERS):
        ka, kb, kf = jax.random.split(k, 3)
        dec_layers.append({'self_attn': init_mha(ka, EMBED_DIM, EMBED_DIM, QKV_DIM, N_HEADS),
                           'enc_attn': init_mha(kb, EMBED_DIM, ENC_DIM, QKV_DIM, N_HEADS),
                           'ffn': init_ffn(kf, EMBED_DIM, D_FF_DEC)})
    params['dec_layers'] = dec_layers

    proj_w, _ = init_linear_params(k_proj, EMBED_DIM, VOCAB, bias=False)
    params['projection_W'] = proj_w.astype(jnp.bfloat16)
    params['projection_b'] = jnp.zeros((1, VOCAB), jnp.float32)   # bias=False -> zero
    return params


# ----------------------------- main -----------------------------

if __name__ == "__main__":
    key = jax.random.PRNGKey(0)
    k_params, k_enc_in, k_caps = jax.random.split(key, 3)

    params = init_transformer(k_params)

    B = 2
    enc_inputs = jax.random.normal(k_enc_in, (B, NUM_PIX, ENC_DIM), jnp.float32)
    caps = jax.random.randint(k_caps, (B, MAX_LEN), 1, VOCAB, dtype=jnp.int32)
    caption_lengths = jnp.array([[6], [8]], jnp.int32)
    pos_idx = jnp.arange(MAX_LEN)[None, :]
    encoded_captions = jnp.where(pos_idx < caption_lengths, caps, 0)

    (predictions, sorted_caps, decode_lengths,
     alphas, sort_ind) = transformer_forward(params, enc_inputs, encoded_captions,
                                             caption_lengths)

    jax.block_until_ready(predictions)
    jax.block_until_ready(alphas['enc_self_attns'][0])
    jax.block_until_ready(alphas['dec_self_attns'][0])
    jax.block_until_ready(alphas['dec_enc_attns'][0])

    assert predictions.shape == (B, MAX_LEN, VOCAB)
    assert alphas['enc_self_attns'][0].shape == (B, N_HEADS, NUM_PIX, NUM_PIX)
    assert alphas['dec_self_attns'][0].shape == (B, N_HEADS, MAX_LEN, MAX_LEN)
    assert alphas['dec_enc_attns'][0].shape == (B, N_HEADS, MAX_LEN, NUM_PIX)
    assert np.all(np.isfinite(np.asarray(predictions)))
    print("KERNEL_OK")
</pallas_src>

<mosaic_0001>
module attributes {stable_mosaic.version = 11 : i64} {
  func.func @_mha_kernel(%arg0: i32, %arg1: memref<1x16x32xbf16, #tpu.memory_space<vmem>>, %arg2: memref<32x64xbf16, #tpu.memory_space<vmem>>, %arg3: memref<1x64xf32, #tpu.memory_space<vmem>>, %arg4: memref<32x128xbf16, #tpu.memory_space<vmem>>, %arg5: memref<1x128xf32, #tpu.memory_space<vmem>>, %arg6: memref<4x16x32xbf16, #tpu.memory_space<vmem>>, %arg7: memref<1x32xf32, #tpu.memory_space<vmem>>, %arg8: memref<1x16x32xbf16, #tpu.memory_space<vmem>>, %arg9: memref<1x4x16x16xf32, #tpu.memory_space<vmem>>) attributes {dimension_semantics = [#tpu.dimension_semantics<parallel>], iteration_bounds = array<i64: 2>, scalar_prefetch = 0 : i64, scratch_operands = 0 : i64, tpu.core_type = #tpu.core_type<tc>, window_params = [{transform_indices = @transform_0, window_bounds = array<i64: 1, 16, 32>}, {pipeline_mode = #tpu.pipeline_mode<synchronous>, transform_indices = @transform_1, window_bounds = array<i64: 32, 64>}, {pipeline_mode = #tpu.pipeline_mode<synchronous>, transform_indices = @transform_2, window_bounds = array<i64: 1, 64>}, {pipeline_mode = #tpu.pipeline_mode<synchronous>, transform_indices = @transform_3, window_bounds = array<i64: 32, 128>}, {pipeline_mode = #tpu.pipeline_mode<synchronous>, transform_indices = @transform_4, window_bounds = array<i64: 1, 128>}, {pipeline_mode = #tpu.pipeline_mode<synchronous>, transform_indices = @transform_5, window_bounds = array<i64: 4, 16, 32>}, {pipeline_mode = #tpu.pipeline_mode<synchronous>, transform_indices = @transform_6, window_bounds = array<i64: 1, 32>}, {transform_indices = @transform_7, window_bounds = array<i64: 1, 16, 32>}, {transform_indices = @transform_8, window_bounds = array<i64: 1, 4, 16, 16>}]} {
    %c0 = arith.constant 0 : index
    %c0_0 = arith.constant 0 : index
    %c0_1 = arith.constant 0 : index
    %0 = vector.load %arg1[%c0, %c0_0, %c0_1] : memref<1x16x32xbf16, #tpu.memory_space<vmem>>, vector<1x16x32xbf16>
    %1 = vector.shape_cast %0 : vector<1x16x32xbf16> to vector<16x32xbf16>
    %c0_2 = arith.constant 0 : index
    %c0_3 = arith.constant 0 : index
    %2 = vector.load %arg2[%c0_2, %c0_3] : memref<32x64xbf16, #tpu.memory_space<vmem>>, vector<32x64xbf16>
    %cst = arith.constant dense<0.000000e+00> : vector<16x64xf32>
    %3 = tpu.matmul %1, %2, %cst {dimension_numbers = #tpu.dot_dimension_numbers<[1], [0], [0], [1], [0, 0, 1, 1], [], []>} : vector<16x32xbf16>, vector<32x64xbf16>, vector<16x64xf32> -> vector<16x64xf32>
    %c0_4 = arith.constant 0 : index
    %c0_5 = arith.constant 0 : index
    %4 = vector.load %arg3[%c0_4, %c0_5] : memref<1x64xf32, #tpu.memory_space<vmem>>, vector<1x64xf32>
    %5 = vector.broadcast %4 : vector<1x64xf32> to vector<16x64xf32>
    %6 = arith.addf %3, %5 : vector<16x64xf32>
    %c0_6 = arith.constant 0 : index
    %c0_7 = arith.constant 0 : index
    %7 = vector.load %arg4[%c0_6, %c0_7] : memref<32x128xbf16, #tpu.memory_space<vmem>>, vector<32x128xbf16>
    %cst_8 = arith.constant dense<0.000000e+00> : vector<16x128xf32>
    %8 = tpu.matmul %1, %7, %cst_8 {dimension_numbers = #tpu.dot_dimension_numbers<[1], [0], [0], [1], [0, 0, 1, 1], [], []>} : vector<16x32xbf16>, vector<32x128xbf16>, vector<16x128xf32> -> vector<16x128xf32>
    %c0_9 = arith.constant 0 : index
    %c0_10 = arith.constant 0 : index
    %9 = vector.load %arg5[%c0_9, %c0_10] : memref<1x128xf32, #tpu.memory_space<vmem>>, vector<1x128xf32>
    %10 = vector.broadcast %9 : vector<1x128xf32> to vector<16x128xf32>
    %11 = arith.addf %8, %10 : vector<16x128xf32>
    %12 = vector.extract_strided_slice %11 {offsets = [0, 0], sizes = [16, 64], strides = [1, 1]} : vector<16x128xf32> to vector<16x64xf32>
    %13 = vector.extract_strided_slice %11 {offsets = [0, 64], sizes = [16, 64], strides = [1, 1]} : vector<16x128xf32> to vector<16x64xf32>
    %14 = vector.extract_strided_slice %6 {offsets = [0, 0], sizes = [16, 16], strides = [1, 1]} : vector<16x64xf32> to vector<16x16xf32>
    %15 = arith.truncf %14 : vector<16x16xf32> to vector<16x16xbf16>
    %16 = vector.extract_strided_slice %12 {offsets = [0, 0], sizes = [16, 16], strides = [1, 1]} : vector<16x64xf32> to vector<16x16xf32>
    %17 = arith.truncf %16 : vector<16x16xf32> to vector<16x16xbf16>
    %cst_11 = arith.constant dense<0.000000e+00> : vector<16x16xf32>
    %18 = tpu.matmul %15, %17, %cst_11 {dimension_numbers = #tpu.dot_dimension_numbers<[1], [1], [0], [0], [0, 0, 1, 0], [], []>} : vector<16x16xbf16>, vector<16x16xbf16>, vector<16x16xf32> -> vector<16x16xf32>
    %19 = vector.extract_strided_slice %6 {offsets = [0, 16], sizes = [16, 16], strides = [1, 1]} : vector<16x64xf32> to vector<16x16xf32>
    %20 = arith.truncf %19 : vector<16x16xf32> to vector<16x16xbf16>
    %21 = vector.extract_strided_slice %12 {offsets = [0, 16], sizes = [16, 16], strides = [1, 1]} : vector<16x64xf32> to vector<16x16xf32>
    %22 = arith.truncf %21 : vector<16x16xf32> to vector<16x16xbf16>
    %cst_12 = arith.constant dense<0.000000e+00> : vector<16x16xf32>
    %23 = tpu.matmul %20, %22, %cst_12 {dimension_numbers = #tpu.dot_dimension_numbers<[1], [1], [0], [0], [0, 0, 1, 0], [], []>} : vector<16x16xbf16>, vector<16x16xbf16>, vector<16x16xf32> -> vector<16x16xf32>
    %24 = vector.extract_strided_slice %6 {offsets = [0, 32], sizes = [16, 16], strides = [1, 1]} : vector<16x64xf32> to vector<16x16xf32>
    %25 = arith.truncf %24 : vector<16x16xf32> to vector<16x16xbf16>
    %26 = vector.extract_strided_slice %12 {offsets = [0, 32], sizes = [16, 16], strides = [1, 1]} : vector<16x64xf32> to vector<16x16xf32>
    %27 = arith.truncf %26 : vector<16x16xf32> to vector<16x16xbf16>
    %cst_13 = arith.constant dense<0.000000e+00> : vector<16x16xf32>
    %28 = tpu.matmul %25, %27, %cst_13 {dimension_numbers = #tpu.dot_dimension_numbers<[1], [1], [0], [0], [0, 0, 1, 0], [], []>} : vector<16x16xbf16>, vector<16x16xbf16>, vector<16x16xf32> -> vector<16x16xf32>
    %29 = vector.extract_strided_slice %6 {offsets = [0, 48], sizes = [16, 16], strides = [1, 1]} : vector<16x64xf32> to vector<16x16xf32>
    %30 = arith.truncf %29 : vector<16x16xf32> to vector<16x16xbf16>
    %31 = vector.extract_strided_slice %12 {offsets = [0, 48], sizes = [16, 16], strides = [1, 1]} : vector<16x64xf32> to vector<16x16xf32>
    %32 = arith.truncf %31 : vector<16x16xf32> to vector<16x16xbf16>
    %cst_14 = arith.constant dense<0.000000e+00> : vector<16x16xf32>
    %33 = tpu.matmul %30, %32, %cst_14 {dimension_numbers = #tpu.dot_dimension_numbers<[1], [1], [0], [0], [0, 0, 1, 0], [], []>} : vector<16x16xbf16>, vector<16x16xbf16>, vector<16x16xf32> -> vector<16x16xf32>
    %34 = vector.shape_cast %18 : vector<16x16xf32> to vector<1x16x16xf32>
    %35 = vector.shape_cast %23 : vector<16x16xf32> to vector<1x16x16xf32>
    %36 = vector.shape_cast %28 : vector<16x16xf32> to vector<1x16x16xf32>
    %37 = vector.shape_cast %33 : vector<16x16xf32> to vector<1x16x16xf32>
    %38 = tpu.concatenate %34, %35, %36, %37 in 0 : vector<1x16x16xf32>, vector<1x16x16xf32>, vector<1x16x16xf32>, vector<1x16x16xf32> -> vector<4x16x16xf32>
    %cst_15 = arith.constant dense<0xFF800000> : vector<4x16xf32>
    %39 = vector.multi_reduction <maximumf>, %38, %cst_15 [2] : vector<4x16x16xf32> to vector<4x16xf32>
    %40 = vector.shape_cast %39 : vector<4x16xf32> to vector<4x16x1xf32>
    %41 = vector.broadcast %40 : vector<4x16x1xf32> to vector<4x16x16xf32>
    %42 = arith.subf %38, %41 : vector<4x16x16xf32>
    %43 = math.exp %42 : vector<4x16x16xf32>
    %cst_16 = arith.constant dense<0.000000e+00> : vector<4x16xf32>
    %44 = vector.multi_reduction <add>, %43, %cst_16 [2] : vector<4x16x16xf32> to vector<4x16xf32>
    %45 = vector.shape_cast %44 : vector<4x16xf32> to vector<4x16x1xf32>
    %46 = tpu.reciprocal %45 {approx = true} : vector<4x16x1xf32> -> vector<4x16x1xf32>
    %47 = vector.broadcast %46 : vector<4x16x1xf32> to vector<4x16x16xf32>
    %48 = arith.mulf %43, %47 : vector<4x16x16xf32>
    %c0_17 = arith.constant 0 : index
    %c0_18 = arith.constant 0 : index
    %c0_19 = arith.constant 0 : index
    %c0_20 = arith.constant 0 : index
    %49 = vector.load %arg9[%c0_17, %c0_18, %c0_19, %c0_20] : memref<1x4x16x16xf32, #tpu.memory_space<vmem>>, vector<1x4x16x16xf32>
    %50 = vector.shape_cast %49 : vector<1x4x16x16xf32> to vector<4x16x16xf32>
    %51 = vector.shape_cast %48 : vector<4x16x16xf32> to vector<1x4x16x16xf32>
    tpu.vector_store %arg9[%c0_17, %c0_18, %c0_19, %c0_20], %51 {strides = array<i32>} : memref<1x4x16x16xf32, #tpu.memory_space<vmem>>, vector<1x4x16x16xf32>,
    %cst_21 = arith.constant 0.000000e+00 : f32
    %52 = vector.broadcast %cst_21 : f32 to vector<16x32xf32>
    %53 = vector.extract_strided_slice %48 {offsets = [0, 0, 0], sizes = [1, 16, 16], strides = [1, 1, 1]} : vector<4x16x16xf32> to vector<1x16x16xf32>
    %54 = vector.shape_cast %53 : vector<1x16x16xf32> to vector<16x16xf32>
    %55 = arith.truncf %54 : vector<16x16xf32> to vector<16x16xbf16>
    %56 = vector.extract_strided_slice %13 {offsets = [0, 0], sizes = [16, 16], strides = [1, 1]} : vector<16x64xf32> to vector<16x16xf32>
    %57 = arith.truncf %56 : vector<16x16xf32> to vector<16x16xbf16>
    %cst_22 = arith.constant dense<0.000000e+00> : vector<16x16xf32>
    %58 = tpu.matmul %55, %57, %cst_22 {dimension_numbers = #tpu.dot_dimension_numbers<[1], [0], [0], [1], [0, 0, 1, 1], [], []>} : vector<16x16xbf16>, vector<16x16xbf16>, vector<16x16xf32> -> vector<16x16xf32>
    %59 = arith.truncf %58 : vector<16x16xf32> to vector<16x16xbf16>
    %c0_23 = arith.constant 0 : index
    %c0_24 = arith.constant 0 : index
    %c0_25 = arith.constant 0 : index
    %60 = vector.load %arg6[%c0_23, %c0_24, %c0_25] : memref<4x16x32xbf16, #tpu.memory_space<vmem>>, vector<1x16x32xbf16>
    %61 = vector.shape_cast %60 : vector<1x16x32xbf16> to vector<16x32xbf16>
    %cst_26 = arith.constant dense<0.000000e+00> : vector<16x32xf32>
    %62 = tpu.matmul %59, %61, %cst_26 {dimension_numbers = #tpu.dot_dimension_numbers<[1], [0], [0], [1], [0, 0, 1, 1], [], []>} : vector<16x16xbf16>, vector<16x32xbf16>, vector<16x32xf32> -> vector<16x32xf32>
    %63 = arith.addf %52, %62 : vector<16x32xf32>
    %64 = vector.extract_strided_slice %48 {offsets = [1, 0, 0], sizes = [1, 16, 16], strides = [1, 1, 1]} : vector<4x16x16xf32> to vector<1x16x16xf32>
    %65 = vector.shape_cast %64 : vector<1x16x16xf32> to vector<16x16xf32>
    %66 = arith.truncf %65 : vector<16x16xf32> to vector<16x16xbf16>
    %67 = vector.extract_strided_slice %13 {offsets = [0, 16], sizes = [16, 16], strides = [1, 1]} : vector<16x64xf32> to vector<16x16xf32>
    %68 = arith.truncf %67 : vector<16x16xf32> to vector<16x16xbf16>
    %cst_27 = arith.constant dense<0.000000e+00> : vector<16x16xf32>
    %69 = tpu.matmul %66, %68, %cst_27 {dimension_numbers = #tpu.dot_dimension_numbers<[1], [0], [0], [1], [0, 0, 1, 1], [], []>} : vector<16x16xbf16>, vector<16x16xbf16>, vector<16x16xf32> -> vector<16x16xf32>
    %70 = arith.truncf %69 : vector<16x16xf32> to vector<16x16xbf16>
    %c1 = arith.constant 1 : index
    %c0_28 = arith.constant 0 : index
    %c0_29 = arith.constant 0 : index
    %71 = vector.load %arg6[%c1, %c0_28, %c0_29] : memref<4x16x32xbf16, #tpu.memory_space<vmem>>, vector<1x16x32xbf16>
    %72 = vector.shape_cast %71 : vector<1x16x32xbf16> to vector<16x32xbf16>
    %cst_30 = arith.constant dense<0.000000e+00> : vector<16x32xf32>
    %73 = tpu.matmul %70, %72, %cst_30 {dimension_numbers = #tpu.dot_dimension_numbers<[1], [0], [0], [1], [0, 0, 1, 1], [], []>} : vector<16x16xbf16>, vector<16x32xbf16>, vector<16x32xf32> -> vector<16x32xf32>
    %74 = arith.addf %63, %73 : vector<16x32xf32>
    %75 = vector.extract_strided_slice %48 {offsets = [2, 0, 0], sizes = [1, 16, 16], strides = [1, 1, 1]} : vector<4x16x16xf32> to vector<1x16x16xf32>
    %76 = vector.shape_cast %75 : vector<1x16x16xf32> to vector<16x16xf32>
    %77 = arith.truncf %76 : vector<16x16xf32> to vector<16x16xbf16>
    %78 = vector.extract_strided_slice %13 {offsets = [0, 32], sizes = [16, 16], strides = [1, 1]} : vector<16x64xf32> to vector<16x16xf32>
    %79 = arith.truncf %78 : vector<16x16xf32> to vector<16x16xbf16>
    %cst_31 = arith.constant dense<0.000000e+00> : vector<16x16xf32>
    %80 = tpu.matmul %77, %79, %cst_31 {dimension_numbers = #tpu.dot_dimension_numbers<[1], [0], [0], [1], [0, 0, 1, 1], [], []>} : vector<16x16xbf16>, vector<16x16xbf16>, vector<16x16xf32> -> vector<16x16xf32>
    %81 = arith.truncf %80 : vector<16x16xf32> to vector<16x16xbf16>
    %c2 = arith.constant 2 : index
    %c0_32 = arith.constant 0 : index
    %c0_33 = arith.constant 0 : index
    %82 = vector.load %arg6[%c2, %c0_32, %c0_33] : memref<4x16x32xbf16, #tpu.memory_space<vmem>>, vector<1x16x32xbf16>
    %83 = vector.shape_cast %82 : vector<1x16x32xbf16> to vector<16x32xbf16>
    %cst_34 = arith.constant dense<0.000000e+00> : vector<16x32xf32>
    %84 = tpu.matmul %81, %83, %cst_34 {dimension_numbers = #tpu.dot_dimension_numbers<[1], [0], [0], [1], [0, 0, 1, 1], [], []>} : vector<16x16xbf16>, vector<16x32xbf16>, vector<16x32xf32> -> vector<16x32xf32>
    %85 = arith.addf %74, %84 : vector<16x32xf32>
    %86 = vector.extract_strided_slice %48 {offsets = [3, 0, 0], sizes = [1, 16, 16], strides = [1, 1, 1]} : vector<4x16x16xf32> to vector<1x16x16xf32>
    %87 = vector.shape_cast %86 : vector<1x16x16xf32> to vector<16x16xf32>
    %88 = arith.truncf %87 : vector<16x16xf32> to vector<16x16xbf16>
    %89 = vector.extract_strided_slice %13 {offsets = [0, 48], sizes = [16, 16], strides = [1, 1]} : vector<16x64xf32> to vector<16x16xf32>
    %90 = arith.truncf %89 : vector<16x16xf32> to vector<16x16xbf16>
    %cst_35 = arith.constant dense<0.000000e+00> : vector<16x16xf32>
    %91 = tpu.matmul %88, %90, %cst_35 {dimension_numbers = #tpu.dot_dimension_numbers<[1], [0], [0], [1], [0, 0, 1, 1], [], []>} : vector<16x16xbf16>, vector<16x16xbf16>, vector<16x16xf32> -> vector<16x16xf32>
    %92 = arith.truncf %91 : vector<16x16xf32> to vector<16x16xbf16>
    %c3 = arith.constant 3 : index
    %c0_36 = arith.constant 0 : index
    %c0_37 = arith.constant 0 : index
    %93 = vector.load %arg6[%c3, %c0_36, %c0_37] : memref<4x16x32xbf16, #tpu.memory_space<vmem>>, vector<1x16x32xbf16>
    %94 = vector.shape_cast %93 : vector<1x16x32xbf16> to vector<16x32xbf16>
    %cst_38 = arith.constant dense<0.000000e+00> : vector<16x32xf32>
    %95 = tpu.matmul %92, %94, %cst_38 {dimension_numbers = #tpu.dot_dimension_numbers<[1], [0], [0], [1], [0, 0, 1, 1], [], []>} : vector<16x16xbf16>, vector<16x32xbf16>, vector<16x32xf32> -> vector<16x32xf32>
    %96 = arith.addf %85, %95 : vector<16x32xf32>
    %c0_39 = arith.constant 0 : index
    %c0_40 = arith.constant 0 : index
    %97 = vector.load %arg7[%c0_39, %c0_40] : memref<1x32xf32, #tpu.memory_space<vmem>>, vector<1x32xf32>
    %98 = vector.broadcast %97 : vector<1x32xf32> to vector<16x32xf32>
    %99 = arith.addf %96, %98 : vector<16x32xf32>
    %100 = vector.shape_cast %0 : vector<1x16x32xbf16> to vector<16x32xbf16>
    %101 = arith.extf %100 : vector<16x32xbf16> to vector<16x32xf32>
    %102 = arith.addf %99, %101 : vector<16x32xf32>
    %cst_41 = arith.constant dense<0.000000e+00> : vector<16xf32>
    %103 = vector.multi_reduction <add>, %102, %cst_41 [1] : vector<16x32xf32> to vector<16xf32>
    %104 = vector.shape_cast %103 : vector<16xf32> to vector<16x1xf32>
    %cst_42 = arith.constant 3.200000e+01 : f32
    %105 = vector.broadcast %cst_42 : f32 to vector<16x1xf32>
    %106 = arith.divf %104, %105 : vector<16x1xf32>
    %107 = arith.mulf %102, %102 : vector<16x32xf32>
    %cst_43 = arith.constant dense<0.000000e+00> : vector<16xf32>
    %108 = vector.multi_reduction <add>, %107, %cst_43 [1] : vector<16x32xf32> to vector<16xf32>
    %109 = vector.shape_cast %108 : vector<16xf32> to vector<16x1xf32>
    %cst_44 = arith.constant 3.200000e+01 : f32
    %110 = vector.broadcast %cst_44 : f32 to vector<16x1xf32>
    %111 = arith.divf %109, %110 : vector<16x1xf32>
    %112 = arith.mulf %106, %106 : vector<16x1xf32>
    %113 = arith.subf %111, %112 : vector<16x1xf32>
    %114 = vector.broadcast %106 : vector<16x1xf32> to vector<16x32xf32>
    %115 = arith.subf %102, %114 : vector<16x32xf32>
    %cst_45 = arith.constant 9.99999974E-6 : f32
    %116 = vector.broadcast %cst_45 : f32 to vector<16x1xf32>
    %117 = arith.addf %113, %116 : vector<16x1xf32>
    %118 = math.rsqrt %117 : vector<16x1xf32>
    %119 = vector.broadcast %118 : vector<16x1xf32> to vector<16x32xf32>
    %120 = arith.mulf %115, %119 : vector<16x32xf32>
    %121 = arith.truncf %120 : vector<16x32xf32> to vector<16x32xbf16>
    %c0_46 = arith.constant 0 : index
    %c0_47 = arith.constant 0 : index
    %c0_48 = arith.constant 0 : index
    %122 = vector.load %arg8[%c0_46, %c0_47, %c0_48] : memref<1x16x32xbf16, #tpu.memory_space<vmem>>, vector<1x16x32xbf16>
    %123 = vector.shape_cast %122 : vector<1x16x32xbf16> to vector<16x32xbf16>
    %124 = vector.shape_cast %121 : vector<16x32xbf16> to vector<1x16x32xbf16>
    tpu.vector_store %arg8[%c0_46, %c0_47, %c0_48], %124 {strides = array<i32>} : memref<1x16x32xbf16, #tpu.memory_space<vmem>>, vector<1x16x32xbf16>,
    return
  }
  func.func @transform_0(%arg0: i32) -> (i32, i32, i32) {
    %c0_i32 = arith.constant 0 : i32
    %c0_i32_0 = arith.constant 0 : i32
    %c0_i32_1 = arith.constant 0 : i32
    return %arg0, %c0_i32, %c0_i32_0 : i32, i32, i32
  }
  func.func @transform_1(%arg0: i32) -> (i32, i32) {
    %c0_i32 = arith.constant 0 : i32
    %c0_i32_0 = arith.constant 0 : i32
    %c0_i32_1 = arith.constant 0 : i32
    return %c0_i32, %c0_i32_0 : i32, i32
  }
  func.func @transform_2(%arg0: i32) -> (i32, i32) {
    %c0_i32 = arith.constant 0 : i32
    %c0_i32_0 = arith.constant 0 : i32
    %c0_i32_1 = arith.constant 0 : i32
    return %c0_i32, %c0_i32_0 : i32, i32
  }
  func.func @transform_3(%arg0: i32) -> (i32, i32) {
    %c0_i32 = arith.constant 0 : i32
    %c0_i32_0 = arith.constant 0 : i32
    %c0_i32_1 = arith.constant 0 : i32
    return %c0_i32, %c0_i32_0 : i32, i32
  }
  func.func @transform_4(%arg0: i32) -> (i32, i32) {
    %c0_i32 = arith.constant 0 : i32
    %c0_i32_0 = arith.constant 0 : i32
    %c0_i32_1 = arith.constant 0 : i32
    return %c0_i32, %c0_i32_0 : i32, i32
  }
  func.func @transform_5(%arg0: i32) -> (i32, i32, i32) {
    %c0_i32 = arith.constant 0 : i32
    %c0_i32_0 = arith.constant 0 : i32
    %c0_i32_1 = arith.constant 0 : i32
    %c0_i32_2 = arith.constant 0 : i32
    return %c0_i32, %c0_i32_0, %c0_i32_1 : i32, i32, i32
  }
  func.func @transform_6(%arg0: i32) -> (i32, i32) {
    %c0_i32 = arith.constant 0 : i32
    %c0_i32_0 = arith.constant 0 : i32
    %c0_i32_1 = arith.constant 0 : i32
    return %c0_i32, %c0_i32_0 : i32, i32
  }
  func.func @transform_7(%arg0: i32) -> (i32, i32, i32) {
    %c0_i32 = arith.constant 0 : i32
    %c0_i32_0 = arith.constant 0 : i32
    %c0_i32_1 = arith.constant 0 : i32
    return %arg0, %c0_i32, %c0_i32_0 : i32, i32, i32
  }
  func.func @transform_8(%arg0: i32) -> (i32, i32, i32, i32) {
    %c0_i32 = arith.constant 0 : i32
    %c0_i32_0 = arith.constant 0 : i32
    %c0_i32_1 = arith.constant 0 : i32
    %c0_i32_2 = arith.constant 0 : i32
    return %arg0, %c0_i32, %c0_i32_0, %c0_i32_1 : i32, i32, i32, i32
  }
}

</mosaic_0001>

<llo_original>
// kernel: tpu_custom_call.1
$region0: #{tpu_custom_call.1}
  #allocation0 [shape = 'u32[]', space=smem, size = 0x4, offset = 0x4, fixed_abs, tag = 'smem constant byte address 0x4 - core index']
  #allocation1 [shape = 'u32[144,128]{1,0:T(1,128)}', space=vmem, size = 0x12000, scoped, tag = 'internal scratch']
  %s0 = inlined_call_operand.hbm [shape: bf16[2,16,32], index: 0, kind: input, shape index: {}]
  %s1 = inlined_call_operand.hbm [shape: bf16[32,64], index: 1, kind: input, shape index: {}]
  %s2 = inlined_call_operand.vmem [shape: f32[1,64], index: 2, kind: input, shape index: {}]
  %s3 = inlined_call_operand.hbm [shape: bf16[32,128], index: 3, kind: input, shape index: {}]
  %s4 = inlined_call_operand.vmem [shape: f32[1,128], index: 4, kind: input, shape index: {}]
  %s5 = inlined_call_operand.hbm [shape: bf16[4,16,32], index: 5, kind: input, shape index: {}]
  %s6 = inlined_call_operand.vmem [shape: f32[1,32], index: 6, kind: input, shape index: {}]
  %s7 = inlined_call_operand.hbm [shape: bf16[2,16,32], index: 7, kind: output, shape index: {0}]
  %s8 = inlined_call_operand.hbm [shape: f32[2,4,16,16], index: 8, kind: output, shape index: {1}]
  %9 = xla_tuple %s7, %s8
  %s10 = sld [smem:[#allocation0]]
  $region85: #{tpu_custom_call.1} parent=0
    _
  %s12 = ssub.s32 1, %s10
  %s13 = scalar_select 0, %s12, %s10
  $region1: #{tpu_custom_call.1} parent=0
    #allocation2 [shape = 'u8[8192]{0}', space=vmem, size = 0x2000, scoped, tag = 'input window, operand 0']
    #allocation3 [shape = 's32[2]{0}', space=sflag, size = 0x8, scoped, tag = 'scoped memory for tpu_custom_call.1']
    #allocation4 [shape = 's32[2]{0}', space=sflag, size = 0x8, scoped, tag = 'scoped memory for tpu_custom_call.1']
    #allocation5 [shape = 'u8[8192]{0}', space=vmem, size = 0x2000, scoped, tag = 'input window, operand 1, single buffered']
    #allocation6 [shape = 's32[1]{0}', space=sflag, size = 0x4, scoped, tag = 'scoped memory for tpu_custom_call.1']
    #allocation7 [shape = 'u8[8192]{0}', space=vmem, size = 0x2000, scoped, tag = 'input window, operand 3, single buffered']
    #allocation8 [shape = 'u8[16384]{0}', space=vmem, size = 0x4000, scoped, tag = 'input window, operand 5, single buffered']
    #allocation9 [shape = 's32[1]{0}', space=sflag, size = 0x4, scoped, tag = 'scoped memory for tpu_custom_call.1']
    #allocation10 [shape = 'u8[8192]{0}', space=vmem, size = 0x2000, scoped, tag = 'output window, operand 0']
    #allocation11 [shape = 'u8[65536]{0}', space=vmem, size = 0x10000, scoped, tag = 'output window, operand 1']
    #allocation12 [shape = 's32[2]{0}', space=sflag, size = 0x8, scoped, tag = 'scoped memory for tpu_custom_call.1']
    %14 = vsyncpa [#allocation3], 0
    %s15 = scalar_lea.sflag [#allocation3], 1
    %16 = vsyncpa %s15, 0
    %17 = vsyncpa [#allocation6], 0
    %18 = vsyncpa [#allocation9], 0
    %19 = vsyncpa [#allocation4], 0
    %s20 = scalar_lea.sflag [#allocation4], 1
    %21 = vsyncpa %s20, 0
    %22 = vsyncpa [#allocation12], 0
    %s23 = scalar_lea.sflag [#allocation12], 1
    %24 = vsyncpa %s23, 0
    loop: start=0, step=1, limit=4
    $region2: #{tpu_custom_call.1} parent=1 // loop_pre_header
      _
    $region3: #{tpu_custom_call.1} parent=1 // loop_header
      %s26 = sphi 0, %s30
      %p27 = scmp.ge.s32.totalorder %s26, 4
      %s36 = sphi 0, %s38
      %s39 = sphi 0, %s36
      %s40 = sphi 0, %s39
      %s56 = sphi 0, %s40
      %s60 = sphi 0, %s60
      %s62 = sphi 0, %s60
      %s63 = sphi 0, %s62
      %s77 = sphi 0, %s63
      %s81 = sphi 0, %s81
      %s83 = sphi 0, %s81
      %s84 = sphi 0, %s83
      %s98 = sphi 0, %s84
      %s102 = sphi 0, %s102
      %s104 = sphi 0, %s102
      %s105 = sphi 0, %s104
      %s119 = sphi 0, %s105
      %s123 = sphi 0, %s123
      %s125 = sphi 0, %s123
      %s126 = sphi 0, %s125
      %s140 = sphi 0, %s126
      %s144 = sphi 0, %s144
      %s146 = sphi 0, %s144
      %s147 = sphi 0, %s146
      %s161 = sphi 0, %s147
      %s165 = sphi 0, %s165
      %s167 = sphi 0, %s165
      %s168 = sphi 0, %s167
      %s182 = sphi 0, %s168
      %s188 = sphi 0, %s190
      %s191 = sphi 0, %s188
      %s192 = sphi 0, %s191
      %s208 = sphi 0, %s192
      %s214 = sphi 0, %s216
      %s217 = sphi 0, %s214
      %s218 = sphi 0, %s217
      %s234 = sphi 0, %s218
    $region4: #{tpu_custom_call.1} parent=1 // loop_header_branch
      %29 = sbr.rel (%p27) target = $region8
    $region5: #{tpu_custom_call.1} parent=1 // loop_body
      %s31 = ssub.s32 %s26, 1
      %s32 = ssub.s32 %s26, 2
      %s33 = sadd.s32 %s26, 1
      %s34 = ssub.s32 %s26, %s33
      %p35 = scmp.eq.s32.totalorder %s34, 0
      %s37 = sadd.s32 %s36, 1
      %s38 = scalar_select %p35, %s36, %s37
      %p41 = pneg %p35
      %p42 = scmp.eq.s32.totalorder %s26, 1
      %p43 = por %p41, %p42
      %p44 = scmp.ne.s32.totalorder %s36, %s39
      %p45 = scmp.eq.s32.totalorder %s26, 0
      %p46 = por %p44, %p45
      %p47 = scmp.ne.s32.totalorder %s36, %s39
      %p48 = scmp.eq.s32.totalorder %s31, 1
      %p49 = por %p47, %p48
      %p50 = scmp.ne.s32.totalorder %s39, %s40
      %p51 = scmp.eq.s32.totalorder %s31, 0
      %p52 = por %p50, %p51
      %p53 = scmp.ne.s32.totalorder %s39, %s40
      %p54 = scmp.eq.s32.totalorder %s32, 1
      %p55 = por %p53, %p54
      %p57 = scmp.ne.s32.totalorder %s40, %s56
      %p58 = scmp.eq.s32.totalorder %s32, 0
      %p59 = por %p57, %p58
      %s61 = sadd.s32 %s60, 1
      %p64 = scmp.eq.s32.totalorder %s26, 1
      %p65 = scmp.ne.s32.totalorder %s60, %s62
      %p66 = scmp.eq.s32.totalorder %s26, 0
      %p67 = por %p65, %p66
      %p68 = scmp.ne.s32.totalorder %s60, %s62
      %p69 = scmp.eq.s32.totalorder %s31, 1
      %p70 = por %p68, %p69
      %p71 = scmp.ne.s32.totalorder %s62, %s63
      %p72 = scmp.eq.s32.totalorder %s31, 0
      %p73 = por %p71, %p72
      %p74 = scmp.ne.s32.totalorder %s62, %s63
      %p75 = scmp.eq.s32.totalorder %s32, 1
      %p76 = por %p74, %p75
      %p78 = scmp.ne.s32.totalorder %s63, %s77
      %p79 = scmp.eq.s32.totalorder %s32, 0
      %p80 = por %p78, %p79
      %s82 = sadd.s32 %s81, 1
      %p85 = scmp.eq.s32.totalorder %s26, 1
      %p86 = scmp.ne.s32.totalorder %s81, %s83
      %p87 = scmp.eq.s32.totalorder %s26, 0
      %p88 = por %p86, %p87
      %p89 = scmp.ne.s32.totalorder %s81, %s83
      %p90 = scmp.eq.s32.totalorder %s31, 1
      %p91 = por %p89, %p90
      %p92 = scmp.ne.s32.totalorder %s83, %s84
      %p93 = scmp.eq.s32.totalorder %s31, 0
      %p94 = por %p92, %p93
      %p95 = scmp.ne.s32.totalorder %s83, %s84
      %p96 = scmp.eq.s32.totalorder %s32, 1
      %p97 = por %p95, %p96
      %p99 = scmp.ne.s32.totalorder %s84, %s98
      %p100 = scmp.eq.s32.totalorder %s32, 0
      %p101 = por %p99, %p100
      %s103 = sadd.s32 %s102, 1
      %p106 = scmp.eq.s32.totalorder %s26, 1
      %p107 = scmp.ne.s32.totalorder %s102, %s104
      %p108 = scmp.eq.s32.totalorder %s26, 0
      %p109 = por %p107, %p108
      %p110 = scmp.ne.s32.totalorder %s102, %s104
      %p111 = scmp.eq.s32.totalorder %s31, 1
      %p112 = por %p110, %p111
      %p113 = scmp.ne.s32.totalorder %s104, %s105
      %p114 = scmp.eq.s32.totalorder %s31, 0
      %p115 = por %p113, %p114
      %p116 = scmp.ne.s32.totalorder %s104, %s105
      %p117 = scmp.eq.s32.totalorder %s32, 1
      %p118 = por %p116, %p117
      %p120 = scmp.ne.s32.totalorder %s105, %s119
      %p121 = scmp.eq.s32.totalorder %s32, 0
      %p122 = por %p120, %p121
      %s124 = sadd.s32 %s123, 1
      %p127 = scmp.eq.s32.totalorder %s26, 1
      %p128 = scmp.ne.s32.totalorder %s123, %s125
      %p129 = scmp.eq.s32.totalorder %s26, 0
      %p130 = por %p128, %p129
      %p131 = scmp.ne.s32.totalorder %s123, %s125
      %p132 = scmp.eq.s32.totalorder %s31, 1
      %p133 = por %p131, %p132
      %p134 = scmp.ne.s32.totalorder %s125, %s126
      %p135 = scmp.eq.s32.totalorder %s31, 0
      %p136 = por %p134, %p135
      %p137 = scmp.ne.s32.totalorder %s125, %s126
      %p138 = scmp.eq.s32.totalorder %s32, 1
      %p139 = por %p137, %p138
      %p141 = scmp.ne.s32.totalorder %s126, %s140
      %p142 = scmp.eq.s32.totalorder %s32, 0
      %p143 = por %p141, %p142
      %s145 = sadd.s32 %s144, 1
      %p148 = scmp.eq.s32.totalorder %s26, 1
      %p149 = scmp.ne.s32.totalorder %s144, %s146
      %p150 = scmp.eq.s32.totalorder %s26, 0
      %p151 = por %p149, %p150
      %p152 = scmp.ne.s32.totalorder %s144, %s146
      %p153 = scmp.eq.s32.totalorder %s31, 1
      %p154 = por %p152, %p153
      %p155 = scmp.ne.s32.totalorder %s146, %s147
      %p156 = scmp.eq.s32.totalorder %s31, 0
      %p157 = por %p155, %p156
      %p158 = scmp.ne.s32.totalorder %s146, %s147
      %p159 = scmp.eq.s32.totalorder %s32, 1
      %p160 = por %p158, %p159
      %p162 = scmp.ne.s32.totalorder %s147, %s161
      %p163 = scmp.eq.s32.totalorder %s32, 0
      %p164 = por %p162, %p163
      %s166 = sadd.s32 %s165, 1
      %p169 = scmp.eq.s32.totalorder %s26, 1
      %p170 = scmp.ne.s32.totalorder %s165, %s167
      %p171 = scmp.eq.s32.totalorder %s26, 0
      %p172 = por %p170, %p171
      %p173 = scmp.ne.s32.totalorder %s165, %s167
      %p174 = scmp.eq.s32.totalorder %s31, 1
      %p175 = por %p173, %p174
      %p176 = scmp.ne.s32.totalorder %s167, %s168
      %p177 = scmp.eq.s32.totalorder %s31, 0
      %p178 = por %p176, %p177
      %p179 = scmp.ne.s32.totalorder %s167, %s168
      %p180 = scmp.eq.s32.totalorder %s32, 1
      %p181 = por %p179, %p180
      %p183 = scmp.ne.s32.totalorder %s168, %s182
      %p184 = scmp.eq.s32.totalorder %s32, 0
      %p185 = por %p183, %p184
      %s186 = ssub.s32 %s26, %s33
      %p187 = scmp.eq.s32.totalorder %s186, 0
      %s189 = sadd.s32 %s188, 1
      %s190 = scalar_select %p187, %s188, %s189
      %p193 = pneg %p187
      %p194 = scmp.eq.s32.totalorder %s26, 1
      %p195 = por %p193, %p194
      %p196 = scmp.ne.s32.totalorder %s188, %s191
      %p197 = scmp.eq.s32.totalorder %s26, 0
      %p198 = por %p196, %p197
      %p199 = scmp.ne.s32.totalorder %s188, %s191
      %p200 = scmp.eq.s32.totalorder %s31, 1
      %p201 = por %p199, %p200
      %p202 = scmp.ne.s32.totalorder %s191, %s192
      %p203 = scmp.eq.s32.totalorder %s31, 0
      %p204 = por %p202, %p203
      %p205 = scmp.ne.s32.totalorder %s191, %s192
      %p206 = scmp.eq.s32.totalorder %s32, 1
      %p207 = por %p205, %p206
      %p209 = scmp.ne.s32.totalorder %s192, %s208
      %p210 = scmp.eq.s32.totalorder %s32, 0
      %p211 = por %p209, %p210
      %s212 = ssub.s32 %s26, %s33
      %p213 = scmp.eq.s32.totalorder %s212, 0
      %s215 = sadd.s32 %s214, 1
      %s216 = scalar_select %p213, %s214, %s215
      %p219 = pneg %p213
      %p220 = scmp.eq.s32.totalorder %s26, 1
      %p221 = por %p219, %p220
      %p222 = scmp.ne.s32.totalorder %s214, %s217
      %p223 = scmp.eq.s32.totalorder %s26, 0
      %p224 = por %p222, %p223
      %p225 = scmp.ne.s32.totalorder %s214, %s217
      %p226 = scmp.eq.s32.totalorder %s31, 1
      %p227 = por %p225, %p226
      %p228 = scmp.ne.s32.totalorder %s217, %s218
      %p229 = scmp.eq.s32.totalorder %s31, 0
      %p230 = por %p228, %p229
      %p231 = scmp.ne.s32.totalorder %s217, %s218
      %p232 = scmp.eq.s32.totalorder %s32, 1
      %p233 = por %p231, %p232
      %p235 = scmp.ne.s32.totalorder %s218, %s234
      %p236 = scmp.eq.s32.totalorder %s32, 0
      %p237 = por %p235, %p236
      %p238 = scmp.le.s32.totalorder 1, %s26
      %p239 = scmp.lt.s32.totalorder %s26, 3
      %p240 = pnand %p238, %p239
      %p241 = pneg %p240
      // Predicated region
      $region9: #{tpu_custom_call.1} parent=5 // pred_check
        _
      $region10: #{tpu_custom_call.1} parent=5 // pred_check_branch
        %243 = sbr.rel (%p240) target = $region12
      $region11: #{tpu_custom_call.1} parent=5 // pred_region
        %s244 = ssub.s32 %s26, 1
        // Predicated region
        $region13: #{tpu_custom_call.1} parent=11 // pred_check
          %p245 = pneg %p73
        $region14: #{tpu_custom_call.1} parent=11 // pred_check_branch
          %247 = sbr.rel (%p245) target = $region16
        $region15: #{tpu_custom_call.1} parent=11 // pred_region
          %s249 = ssub.s32 256, 256
          %250 = vsyncadd [#allocation6], %s249
          %s251 = sshll.u32 [#allocation5], 4
          %s252 = int_to_ptr.vmem [resolvable:$true] %s251
          %257 = dma.hbm_to_vmem [thread:$0]  %s1, 256, %s252, [#allocation6], 64, 64, 4
        $region16: #{tpu_custom_call.1} parent=11 // pred_fallthru
          _
        // Predicated region
        $region17: #{tpu_custom_call.1} parent=11 // pred_check
          %p258 = pneg %p94
        $region18: #{tpu_custom_call.1} parent=11 // pred_check_branch
          %260 = sbr.rel (%p258) target = $region20
        $region19: #{tpu_custom_call.1} parent=11 // pred_region
          _
        $region20: #{tpu_custom_call.1} parent=11 // pred_fallthru
          _
        // Predicated region
        $region21: #{tpu_custom_call.1} parent=11 // pred_check
          %p261 = pneg %p115
        $region22: #{tpu_custom_call.1} parent=11 // pred_check_branch
          %263 = sbr.rel (%p261) target = $region24
        $region23: #{tpu_custom_call.1} parent=11 // pred_region
          %s265 = ssub.s32 256, 256
          %266 = vsyncadd [#allocation6], %s265
          %s267 = sshll.u32 [#allocation7], 4
          %s268 = int_to_ptr.vmem [resolvable:$true] %s267
          %273 = dma.hbm_to_vmem [thread:$0]  %s3, 256, %s268, [#allocation6], 64, 64, 4
        $region24: #{tpu_custom_call.1} parent=11 // pred_fallthru
          _
        // Predicated region
        $region25: #{tpu_custom_call.1} parent=11 // pred_check
          %p274 = pneg %p136
        $region26: #{tpu_custom_call.1} parent=11 // pred_check_branch
          %276 = sbr.rel (%p274) target = $region28
        $region27: #{tpu_custom_call.1} parent=11 // pred_region
          _
        $region28: #{tpu_custom_call.1} parent=11 // pred_fallthru
          _
        // Predicated region
        $region29: #{tpu_custom_call.1} parent=11 // pred_check
          %p277 = pneg %p157
        $region30: #{tpu_custom_call.1} parent=11 // pred_check_branch
          %279 = sbr.rel (%p277) target = $region32
        $region31: #{tpu_custom_call.1} parent=11 // pred_region
          %s281 = ssub.s32 512, 512
          %282 = vsyncadd [#allocation9], %s281
          %s283 = sshll.u32 [#allocation8], 4
          %s284 = int_to_ptr.vmem [resolvable:$true] %s283
          %289 = dma.hbm_to_vmem [thread:$0]  %s5, 512, %s284, [#allocation9], 64, 64, 4
        $region32: #{tpu_custom_call.1} parent=11 // pred_fallthru
          _
        // Predicated region
        $region33: #{tpu_custom_call.1} parent=11 // pred_check
          %p290 = pneg %p178
        $region34: #{tpu_custom_call.1} parent=11 // pred_check_branch
          %292 = sbr.rel (%p290) target = $region36
        $region35: #{tpu_custom_call.1} parent=11 // pred_region
          _
        $region36: #{tpu_custom_call.1} parent=11 // pred_fallthru
          _
      $region12: #{tpu_custom_call.1} parent=5 // pred_fallthru
        _
      %p293 = scmp.lt.s32.totalorder %s26, 2
      // Predicated region
      $region37: #{tpu_custom_call.1} parent=5 // pred_check
        %p294 = pneg %p293
      $region38: #{tpu_custom_call.1} parent=5 // pred_check_branch
        %296 = sbr.rel (%p294) target = $region40
      $region39: #{tpu_custom_call.1} parent=5 // pred_region
        // Predicated region
        $region41: #{tpu_custom_call.1} parent=39 // pred_check
          %p297 = pneg %p46
        $region42: #{tpu_custom_call.1} parent=39 // pred_check_branch
          %299 = sbr.rel (%p297) target = $region44
        $region43: #{tpu_custom_call.1} parent=39 // pred_region
          %s300 = sand.u32 %s36, 1
          %s301 = scalar_lea.sflag [#allocation3], %s300
          %s302 = sand.u32 %s36, 1
          %s303 = smul.addr %s302, 8
          %s304 = scalar_lea.vmem [#allocation2], %s303
          %s306 = ssub.s32 128, 128
          %307 = vsyncadd %s301, %s306
          %s308 = smul.addr %s26, 2
          %s309 = smul.addr %s308, 64
          %s310 = scalar_lea.hbm %s0, %s309
          %s311 = sshll.u32 %s304, 4
          %s312 = int_to_ptr.vmem [resolvable:$true] %s311
          %317 = dma.hbm_to_vmem [thread:$0]  %s310, 128, %s312, %s301, 64, 64, 4
        $region44: #{tpu_custom_call.1} parent=39 // pred_fallthru
          _
      $region40: #{tpu_custom_call.1} parent=5 // pred_fallthru
        _
      %p318 = scmp.le.s32.totalorder 1, %s26
      %p319 = scmp.lt.s32.totalorder %s26, 3
      %p320 = pnand %p318, %p319
      %p321 = pneg %p320
      // Predicated region
      $region45: #{tpu_custom_call.1} parent=5 // pred_check
        _
      $region46: #{tpu_custom_call.1} parent=5 // pred_check_branch
        %323 = sbr.rel (%p320) target = $region48
      $region47: #{tpu_custom_call.1} parent=5 // pred_region
        %s324 = ssub.s32 %s26, 1
        %s325 = sand.u32 %s39, 1
        %s326 = scalar_lea.sflag [#allocation3], %s325
        %s327 = sand.u32 %s39, 1
        %s328 = smul.addr %s327, 8
        %s329 = scalar_lea.vmem [#allocation2], %s328
        // Predicated region
        $region49: #{tpu_custom_call.1} parent=47 // pred_check
          %p330 = pneg %p52
        $region50: #{tpu_custom_call.1} parent=47 // pred_check_branch
          %332 = sbr.rel (%p330) target = $region52
        $region51: #{tpu_custom_call.1} parent=47 // pred_region
          %333 = dma.done %s326, 128
        $region52: #{tpu_custom_call.1} parent=47 // pred_fallthru
          _
        // Predicated region
        $region53: #{tpu_custom_call.1} parent=47 // pred_check
          %p334 = pneg %p73
        $region54: #{tpu_custom_call.1} parent=47 // pred_check_branch
          %336 = sbr.rel (%p334) target = $region56
        $region55: #{tpu_custom_call.1} parent=47 // pred_region
          %337 = dma.done [#allocation6], 256
        $region56: #{tpu_custom_call.1} parent=47 // pred_fallthru
          _
        // Predicated region
        $region57: #{tpu_custom_call.1} parent=47 // pred_check
          %p338 = pneg %p115
        $region58: #{tpu_custom_call.1} parent=47 // pred_check_branch
          %340 = sbr.rel (%p338) target = $region60
        $region59: #{tpu_custom_call.1} parent=47 // pred_region
          %341 = dma.done [#allocation6], 256
        $region60: #{tpu_custom_call.1} parent=47 // pred_fallthru
          _
        // Predicated region
        $region61: #{tpu_custom_call.1} parent=47 // pred_check
          %p342 = pneg %p157
        $region62: #{tpu_custom_call.1} parent=47 // pred_check_branch
          %344 = sbr.rel (%p342) target = $region64
        $region63: #{tpu_custom_call.1} parent=47 // pred_region
          %345 = dma.done [#allocation9], 512
        $region64: #{tpu_custom_call.1} parent=47 // pred_fallthru
          _
        %s346 = sand.u32 %s39, 1
        %s347 = scalar_lea.sflag [#allocation3], %s346
        %s348 = sand.u32 %s39, 1
        %s349 = smul.addr %s348, 8
        %s350 = scalar_lea.vmem [#allocation2], %s349
        %p351 = pneg %p52
        %p352 = pneg %p49
        %p353 = pneg %p73
        %p354 = pneg %p70
        %p355 = pneg %p94
        %p356 = pneg %p91
        %p357 = pneg %p115
        %p358 = pneg %p112
        %p359 = pneg %p136
        %p360 = pneg %p133
        %p361 = pneg %p157
        %p362 = pneg %p154
        %p363 = pneg %p178
        %p364 = pneg %p175
        %p365 = pneg %p204
        %p366 = pneg %p201
        %s367 = sand.u32 %s191, 1
        %s368 = scalar_lea.sflag [#allocation4], %s367
        %s369 = sand.u32 %s191, 1
        %s370 = smul.addr %s369, 8
        %s371 = scalar_lea.vmem [#allocation10], %s370
        %p372 = pneg %p230
        %p373 = pneg %p227
        %s374 = sand.u32 %s217, 1
        %s375 = scalar_lea.sflag [#allocation12], %s374
        %s376 = sand.u32 %s217, 1
        %s377 = smul.addr %s376, 64
        %s378 = scalar_lea.vmem [#allocation11], %s377
        %v380 = vld [vmem:[%s329] sm:$0xf]
        %v381 = vld [vmem:[%s329 + $0x4] sm:$0xf]
        %v382 = vld [vmem:[#allocation5] sm:$0xf]
        %v383 = vld [vmem:[#allocation5 + $0x4] sm:$0xf]
        %v384 = vld [vmem:[#allocation5 + $0x8] sm:$0xf]
        %v385 = vld [vmem:[#allocation5 + $0xc] sm:$0xf]
        %v386 = vld [vmem:[%s2] sm:$0x1]
        %v388 = vlaneseq
        %v389 = vshrl.u32 %v388, 7
        %v390 = vsub.s32 0, %v389
        %v391 = vrot.slane %v386, %v390
        %v395 = vunpack.c.l.b16 %v380
        %v396 = vunpack.c.l.b16 %v381
        %v397 = vpack.c.b16 %v396, %v395
        %v402 = vunpack.c.l.b16 %v382
        %v403 = vunpack.c.l.b16 %v383
        %v404 = vunpack.c.l.b16 %v384
        %v405 = vunpack.c.l.b16 %v385
        %v406 = vpack.c.b16 %v403, %v402
        %v407 = vpack.c.b16 %v405, %v404
        %vm410 = vcmask 261120
        %v412 = vsel %vm410, %v397, 0
        %414 = vmatprep.subr.bf16.mxu0 0
        %415 = vmatpush1.bf16.msra.mxu0 %v406
        %416 = vmatprep.subr.bf16.mxu0 0
        %417 = vmatpush1.bf16.msra.mxu0 %v407
        %418 = vmatprep.subr.bf16.mxu0 0
        %419 = vmatpush1.bf16.msra.mxu0 0
        %420 = vmatprep.subr.bf16.mxu0 0
        %421 = vmatpush1.bf16.msra.mxu0 0
        %422 = vmatprep.subr.bf16.mxu0 0
        %423 = vmatpush1.bf16.msra.mxu0 0
        %424 = vmatprep.subr.bf16.mxu0 0
        %425 = vmatpush1.bf16.msra.mxu0 0
        %426 = vmatprep.subr.bf16.mxu0 0
        %427 = vmatpush1.bf16.msra.mxu0 0
        %428 = vmatprep.subr.bf16.mxu0 0
        %429 = vmatpush1.bf16.msra.mxu0 0
        %430 = vmatprep.subr.bf16.mxu0 0
        %431 = vmatpush1.bf16.msra.mxu0 0
        %432 = vmatprep.subr.bf16.mxu0 0
        %433 = vmatpush1.bf16.msra.mxu0 0
        %434 = vmatprep.subr.bf16.mxu0 0
        %435 = vmatpush1.bf16.msra.mxu0 0
        %436 = vmatprep.subr.bf16.mxu0 0
        %437 = vmatpush1.bf16.msra.mxu0 0
        %438 = vmatprep.subr.bf16.mxu0 0
        %439 = vmatpush1.bf16.msra.mxu0 0
        %440 = vmatprep.subr.bf16.mxu0 0
        %441 = vmatpush1.bf16.msra.mxu0 0
        %442 = vmatprep.subr.bf16.mxu0 0
        %443 = vmatpush1.bf16.msra.mxu0 0
        %444 = vmatprep.subr.bf16.mxu0 0
        %445 = vmatpush1.bf16.msra.mxu0 0
        %446 = vmatprep.mubr.bf16.mxu0 0
        %447 = vmatmul.mubr.bf16.gmra.mrb[0].mxu0 %v412
        %v448 = vpop.f32.mrb[0].mxu0
        %v449 = vadd.f32 %v391, %v448
        %v450 = vpop.f32.mrb[0].mxu0
        %v451 = vpop.f32.mrb[0].mxu0
        %v452 = vadd.f32 %v391, %v451
        %v453 = vpop.f32.mrb[0].mxu0
        %454 = vdwg.mxu0
        %v455 = vld [vmem:[#allocation7] sm:$0xf]
        %v456 = vld [vmem:[#allocation7 + $0x4] sm:$0xf]
        %v457 = vld [vmem:[#allocation7 + $0x8] sm:$0xf]
        %v458 = vld [vmem:[#allocation7 + $0xc] sm:$0xf]
        %v459 = vld [vmem:[%s4] sm:$0x1]
        %v461 = vlaneseq
        %v462 = vshrl.u32 %v461, 7
        %v463 = vsub.s32 0, %v462
        %v464 = vrot.slane %v459, %v463
        %v470 = vunpack.c.l.b16 %v455
        %v471 = vunpack.c.l.b16 %v456
        %v472 = vunpack.c.l.b16 %v457
        %v473 = vunpack.c.l.b16 %v458
        %v474 = vpack.c.b16 %v471, %v470
        %v475 = vpack.c.b16 %v473, %v472
        %478 = vmatprep.subr.bf16.mxu0 0
        %479 = vmatpush1.bf16.msra.mxu0 %v474
        %480 = vmatprep.subr.bf16.mxu0 0
        %481 = vmatpush1.bf16.msra.mxu0 %v475
        %482 = vmatprep.subr.bf16.mxu0 0
        %483 = vmatpush1.bf16.msra.mxu0 0
        %484 = vmatprep.subr.bf16.mxu0 0
        %485 = vmatpush1.bf16.msra.mxu0 0
        %486 = vmatprep.subr.bf16.mxu0 0
        %487 = vmatpush1.bf16.msra.mxu0 0
        %488 = vmatprep.subr.bf16.mxu0 0
        %489 = vmatpush1.bf16.msra.mxu0 0
        %490 = vmatprep.subr.bf16.mxu0 0
        %491 = vmatpush1.bf16.msra.mxu0 0
        %492 = vmatprep.subr.bf16.mxu0 0
        %493 = vmatpush1.bf16.msra.mxu0 0
        %494 = vmatprep.subr.bf16.mxu0 0
        %495 = vmatpush1.bf16.msra.mxu0 0
        %496 = vmatprep.subr.bf16.mxu0 0
        %497 = vmatpush1.bf16.msra.mxu0 0
        %498 = vmatprep.subr.bf16.mxu0 0
        %499 = vmatpush1.bf16.msra.mxu0 0
        %500 = vmatprep.subr.bf16.mxu0 0
        %501 = vmatpush1.bf16.msra.mxu0 0
        %502 = vmatprep.subr.bf16.mxu0 0
        %503 = vmatpush1.bf16.msra.mxu0 0
        %504 = vmatprep.subr.bf16.mxu0 0
        %505 = vmatpush1.bf16.msra.mxu0 0
        %506 = vmatprep.subr.bf16.mxu0 0
        %507 = vmatpush1.bf16.msra.mxu0 0
        %508 = vmatprep.subr.bf16.mxu0 0
        %509 = vmatpush1.bf16.msra.mxu0 0
        %510 = vmatprep.mubr.bf16.mxu0 0
        %511 = vmatmul.mubr.bf16.gmra.mrb[0].mxu0 %v412
        %v512 = vpop.f32.mrb[0].mxu0
        %v513 = vadd.f32 %v464, %v512
        %v514 = vpop.f32.mrb[0].mxu0
        %v515 = vpop.f32.mrb[0].mxu0
        %v516 = vadd.f32 %v464, %v515
        %v517 = vpop.f32.mrb[0].mxu0
        %518 = vdwg.mxu0
        %v519 = vpack.c.bf16 %v452, %v449
        %v520 = vpack.c.bf16 %v516, %v513
        %vm521 = vcmask 130048
        %v523 = vsel %vm521, %v519, 0
        %v526 = vsel %vm521, %v520, 0
        %528 = vmatprep.subr.bf16.mxu0 0
        %529 = vmatpush1.bf16.xpose.msra.mxu0 %v526
        %530 = vmatprep.subr.bf16.mxu0 0
        %531 = vmatpush1.bf16.xpose.msra.mxu0 0
        %532 = vmatprep.subr.bf16.mxu0 0
        %533 = vmatpush1.bf16.xpose.msra.mxu0 0
        %534 = vmatprep.subr.bf16.mxu0 0
        %535 = vmatpush1.bf16.xpose.msra.mxu0 0
        %536 = vmatprep.subr.bf16.mxu0 0
        %537 = vmatpush1.bf16.xpose.msra.mxu0 0
        %538 = vmatprep.subr.bf16.mxu0 0
        %539 = vmatpush1.bf16.xpose.msra.mxu0 0
        %540 = vmatprep.subr.bf16.mxu0 0
        %541 = vmatpush1.bf16.xpose.msra.mxu0 0
        %542 = vmatprep.subr.bf16.mxu0 0
        %543 = vmatpush1.bf16.xpose.msra.mxu0 0
        %544 = vmatprep.subr.bf16.mxu0 0
        %545 = vmatpush1.bf16.xpose.msra.mxu0 0
        %546 = vmatprep.subr.bf16.mxu0 0
        %547 = vmatpush1.bf16.xpose.msra.mxu0 0
        %548 = vmatprep.subr.bf16.mxu0 0
        %549 = vmatpush1.bf16.xpose.msra.mxu0 0
        %550 = vmatprep.subr.bf16.mxu0 0
        %551 = vmatpush1.bf16.xpose.msra.mxu0 0
        %552 = vmatprep.subr.bf16.mxu0 0
        %553 = vmatpush1.bf16.xpose.msra.mxu0 0
        %554 = vmatprep.subr.bf16.mxu0 0
        %555 = vmatpush1.bf16.xpose.msra.mxu0 0
        %556 = vmatprep.subr.bf16.mxu0 0
        %557 = vmatpush1.bf16.xpose.msra.mxu0 0
        %558 = vmatprep.subr.bf16.mxu0 0
        %559 = vmatpush1.bf16.xpose.msra.mxu0 0
        %560 = vmatprep.mubr.bf16.mxu0 0
        %561 = vmatmul.mubr.bf16.gmra.mrb[0].mxu0 %v523
        %v562 = vpop.f32.mrb[0].mxu0
        %v563 = vadd.f32 0.0, %v562
        %v564 = vpop.f32.mrb[0].mxu0
        %v565 = vpop.f32.mrb[0].mxu0
        %v566 = vadd.f32 0.0, %v565
        %v567 = vpop.f32.mrb[0].mxu0
        %568 = vdwg.mxu0
        %570 = vrot.lane.b32.xlu0 %v519, 112
        %v571 = vpop.permute.xlu0 %570
        %573 = vrot.lane.b32.xlu0 %v520, 112
        %v574 = vpop.permute.xlu0 %573
        %v576 = vsel %vm521, %v571, 0
        %v579 = vsel %vm521, %v574, 0
        %581 = vmatprep.subr.bf16.mxu0 0
        %582 = vmatpush1.bf16.xpose.msra.mxu0 %v579
        %583 = vmatprep.subr.bf16.mxu0 0
        %584 = vmatpush1.bf16.xpose.msra.mxu0 0
        %585 = vmatprep.subr.bf16.mxu0 0
        %586 = vmatpush1.bf16.xpose.msra.mxu0 0
        %587 = vmatprep.subr.bf16.mxu0 0
        %588 = vmatpush1.bf16.xpose.msra.mxu0 0
        %589 = vmatprep.subr.bf16.mxu0 0
        %590 = vmatpush1.bf16.xpose.msra.mxu0 0
        %591 = vmatprep.subr.bf16.mxu0 0
        %592 = vmatpush1.bf16.xpose.msra.mxu0 0
        %593 = vmatprep.subr.bf16.mxu0 0
        %594 = vmatpush1.bf16.xpose.msra.mxu0 0
        %595 = vmatprep.subr.bf16.mxu0 0
        %596 = vmatpush1.bf16.xpose.msra.mxu0 0
        %597 = vmatprep.subr.bf16.mxu0 0
        %598 = vmatpush1.bf16.xpose.msra.mxu0 0
        %599 = vmatprep.subr.bf16.mxu0 0
        %600 = vmatpush1.bf16.xpose.msra.mxu0 0
        %601 = vmatprep.subr.bf16.mxu0 0
        %602 = vmatpush1.bf16.xpose.msra.mxu0 0
        %603 = vmatprep.subr.bf16.mxu0 0
        %604 = vmatpush1.bf16.xpose.msra.mxu0 0
        %605 = vmatprep.subr.bf16.mxu0 0
        %606 = vmatpush1.bf16.xpose.msra.mxu0 0
        %607 = vmatprep.subr.bf16.mxu0 0
        %608 = vmatpush1.bf16.xpose.msra.mxu0 0
        %609 = vmatprep.subr.bf16.mxu0 0
        %610 = vmatpush1.bf16.xpose.msra.mxu0 0
        %611 = vmatprep.subr.bf16.mxu0 0
        %612 = vmatpush1.bf16.xpose.msra.mxu0 0
        %613 = vmatprep.mubr.bf16.mxu0 0
        %614 = vmatmul.mubr.bf16.gmra.mrb[0].mxu0 %v576
        %v615 = vpop.f32.mrb[0].mxu0
        %v616 = vadd.f32 0.0, %v615
        %v617 = vpop.f32.mrb[0].mxu0
        %v618 = vpop.f32.mrb[0].mxu0
        %v619 = vadd.f32 0.0, %v618
        %v620 = vpop.f32.mrb[0].mxu0
        %621 = vdwg.mxu0
        %622 = vrot.lane.b32.xlu0 %v519, 96
        %v623 = vpop.permute.xlu0 %622
        %624 = vrot.lane.b32.xlu0 %v520, 96
        %v625 = vpop.permute.xlu0 %624
        %v627 = vsel %vm521, %v623, 0
        %v630 = vsel %vm521, %v625, 0
        %632 = vmatprep.subr.bf16.mxu0 0
        %633 = vmatpush1.bf16.xpose.msra.mxu0 %v630
        %634 = vmatprep.subr.bf16.mxu0 0
        %635 = vmatpush1.bf16.xpose.msra.mxu0 0
        %636 = vmatprep.subr.bf16.mxu0 0
        %637 = vmatpush1.bf16.xpose.msra.mxu0 0
        %638 = vmatprep.subr.bf16.mxu0 0
        %639 = vmatpush1.bf16.xpose.msra.mxu0 0
        %640 = vmatprep.subr.bf16.mxu0 0
        %641 = vmatpush1.bf16.xpose.msra.mxu0 0
        %642 = vmatprep.subr.bf16.mxu0 0
        %643 = vmatpush1.bf16.xpose.msra.mxu0 0
        %644 = vmatprep.subr.bf16.mxu0 0
        %645 = vmatpush1.bf16.xpose.msra.mxu0 0
        %646 = vmatprep.subr.bf16.mxu0 0
        %647 = vmatpush1.bf16.xpose.msra.mxu0 0
        %648 = vmatprep.subr.bf16.mxu0 0
        %649 = vmatpush1.bf16.xpose.msra.mxu0 0
        %650 = vmatprep.subr.bf16.mxu0 0
        %651 = vmatpush1.bf16.xpose.msra.mxu0 0
        %652 = vmatprep.subr.bf16.mxu0 0
        %653 = vmatpush1.bf16.xpose.msra.mxu0 0
        %654 = vmatprep.subr.bf16.mxu0 0
        %655 = vmatpush1.bf16.xpose.msra.mxu0 0
        %656 = vmatprep.subr.bf16.mxu0 0
        %657 = vmatpush1.bf16.xpose.msra.mxu0 0
        %658 = vmatprep.subr.bf16.mxu0 0
        %659 = vmatpush1.bf16.xpose.msra.mxu0 0
        %660 = vmatprep.subr.bf16.mxu0 0
        %661 = vmatpush1.bf16.xpose.msra.mxu0 0
        %662 = vmatprep.subr.bf16.mxu0 0
        %663 = vmatpush1.bf16.xpose.msra.mxu0 0
        %664 = vmatprep.mubr.bf16.mxu0 0
        %665 = vmatmul.mubr.bf16.gmra.mrb[0].mxu0 %v627
        %v666 = vpop.f32.mrb[0].mxu0
        %v667 = vadd.f32 0.0, %v666
        %v668 = vpop.f32.mrb[0].mxu0
        %v669 = vpop.f32.mrb[0].mxu0
        %v670 = vadd.f32 0.0, %v669
        %v671 = vpop.f32.mrb[0].mxu0
        %672 = vdwg.mxu0
        %673 = vrot.lane.b32.xlu0 %v519, 80
        %v674 = vpop.permute.xlu0 %673
        %675 = vrot.lane.b32.xlu0 %v520, 80
        %v676 = vpop.permute.xlu0 %675
        %v678 = vsel %vm521, %v674, 0
        %v681 = vsel %vm521, %v676, 0
        %683 = vmatprep.subr.bf16.mxu0 0
        %684 = vmatpush1.bf16.xpose.msra.mxu0 %v681
        %685 = vmatprep.subr.bf16.mxu0 0
        %686 = vmatpush1.bf16.xpose.msra.mxu0 0
        %687 = vmatprep.subr.bf16.mxu0 0
        %688 = vmatpush1.bf16.xpose.msra.mxu0 0
        %689 = vmatprep.subr.bf16.mxu0 0
        %690 = vmatpush1.bf16.xpose.msra.mxu0 0
        %691 = vmatprep.subr.bf16.mxu0 0
        %692 = vmatpush1.bf16.xpose.msra.mxu0 0
        %693 = vmatprep.subr.bf16.mxu0 0
        %694 = vmatpush1.bf16.xpose.msra.mxu0 0
        %695 = vmatprep.subr.bf16.mxu0 0
        %696 = vmatpush1.bf16.xpose.msra.mxu0 0
        %697 = vmatprep.subr.bf16.mxu0 0
        %698 = vmatpush1.bf16.xpose.msra.mxu0 0
        %699 = vmatprep.subr.bf16.mxu0 0
        %700 = vmatpush1.bf16.xpose.msra.mxu0 0
        %701 = vmatprep.subr.bf16.mxu0 0
        %702 = vmatpush1.bf16.xpose.msra.mxu0 0
        %703 = vmatprep.subr.bf16.mxu0 0
        %704 = vmatpush1.bf16.xpose.msra.mxu0 0
        %705 = vmatprep.subr.bf16.mxu0 0
        %706 = vmatpush1.bf16.xpose.msra.mxu0 0
        %707 = vmatprep.subr.bf16.mxu0 0
        %708 = vmatpush1.bf16.xpose.msra.mxu0 0
        %709 = vmatprep.subr.bf16.mxu0 0
        %710 = vmatpush1.bf16.xpose.msra.mxu0 0
        %711 = vmatprep.subr.bf16.mxu0 0
        %712 = vmatpush1.bf16.xpose.msra.mxu0 0
        %713 = vmatprep.subr.bf16.mxu0 0
        %714 = vmatpush1.bf16.xpose.msra.mxu0 0
        %715 = vmatprep.mubr.bf16.mxu0 0
        %716 = vmatmul.mubr.bf16.gmra.mrb[0].mxu0 %v678
        %v717 = vpop.f32.mrb[0].mxu0
        %v718 = vadd.f32 0.0, %v717
        %v719 = vpop.f32.mrb[0].mxu0
        %v720 = vpop.f32.mrb[0].mxu0
        %v721 = vadd.f32 0.0, %v720
        %v722 = vpop.f32.mrb[0].mxu0
        %723 = vdwg.mxu0
        %v724 = vsel %vm521, %v563, -inf
        %725 = vmax.xlane.f32.xlu0 %v724
        %v726 = vpop.xlane.xlu0 %725
        %v727 = vsel %vm521, %v566, -inf
        %728 = vmax.xlane.f32.xlu0 %v727
        %v729 = vpop.xlane.xlu0 %728
        %v730 = vsel %vm521, %v616, -inf
        %731 = vmax.xlane.f32.xlu0 %v730
        %v732 = vpop.xlane.xlu0 %731
        %v733 = vsel %vm521, %v619, -inf
        %734 = vmax.xlane.f32.xlu0 %v733
        %v735 = vpop.xlane.xlu0 %734
        %v736 = vsel %vm521, %v667, -inf
        %737 = vmax.xlane.f32.xlu0 %v736
        %v738 = vpop.xlane.xlu0 %737
        %v739 = vsel %vm521, %v670, -inf
        %740 = vmax.xlane.f32.xlu0 %v739
        %v741 = vpop.xlane.xlu0 %740
        %v742 = vsel %vm521, %v718, -inf
        %743 = vmax.xlane.f32.xlu0 %v742
        %v744 = vpop.xlane.xlu0 %743
        %v745 = vsel %vm521, %v721, -inf
        %746 = vmax.xlane.f32.xlu0 %v745
        %v747 = vpop.xlane.xlu0 %746
        %v748 = vsub.f32 %v563, %v726
        %v749 = vsub.f32 %v566, %v729
        %v750 = vsub.f32 %v616, %v732
        %v751 = vsub.f32 %v619, %v735
        %v752 = vsub.f32 %v667, %v738
        %v753 = vsub.f32 %v670, %v741
        %v754 = vsub.f32 %v718, %v744
        %v755 = vsub.f32 %v721, %v747
        %v756 = vmul.f32 %v748, 1.442695
        %v757 = vpow.pop %v756
        %v758 = vmul.f32 %v749, 1.442695
        %v759 = vpow.pop %v758
        %v760 = vmul.f32 %v750, 1.442695
        %v761 = vpow.pop %v760
        %v762 = vmul.f32 %v751, 1.442695
        %v763 = vpow.pop %v762
        %v764 = vmul.f32 %v752, 1.442695
        %v765 = vpow.pop %v764
        %v766 = vmul.f32 %v753, 1.442695
        %v767 = vpow.pop %v766
        %v768 = vmul.f32 %v754, 1.442695
        %v769 = vpow.pop %v768
        %v770 = vmul.f32 %v755, 1.442695
        %v771 = vpow.pop %v770
        %v772 = vsel %vm521, %v757, 0.0
        %773 = vadd.xlane.f32.xlu0 %v772
        %v774 = vpop.xlane.xlu0 %773
        %v775 = vsel %vm521, %v759, 0.0
        %776 = vadd.xlane.f32.xlu0 %v775
        %v777 = vpop.xlane.xlu0 %776
        %v778 = vsel %vm521, %v761, 0.0
        %779 = vadd.xlane.f32.xlu0 %v778
        %v780 = vpop.xlane.xlu0 %779
        %v781 = vsel %vm521, %v763, 0.0
        %782 = vadd.xlane.f32.xlu0 %v781
        %v783 = vpop.xlane.xlu0 %782
        %v784 = vsel %vm521, %v765, 0.0
        %785 = vadd.xlane.f32.xlu0 %v784
        %v786 = vpop.xlane.xlu0 %785
        %v787 = vsel %vm521, %v767, 0.0
        %788 = vadd.xlane.f32.xlu0 %v787
        %v789 = vpop.xlane.xlu0 %788
        %v790 = vsel %vm521, %v769, 0.0
        %791 = vadd.xlane.f32.xlu0 %v790
        %v792 = vpop.xlane.xlu0 %791
        %v793 = vsel %vm521, %v771, 0.0
        %794 = vadd.xlane.f32.xlu0 %v793
        %v795 = vpop.xlane.xlu0 %794
        %v796 = vrcp.pop %v774
        %v797 = vrcp.pop %v777
        %v798 = vrcp.pop %v780
        %v799 = vrcp.pop %v783
        %v800 = vrcp.pop %v786
        %v801 = vrcp.pop %v789
        %v802 = vrcp.pop %v792
        %v803 = vrcp.pop %v795
        %v804 = vmul.f32 %v757, %v796
        %v805 = vmul.f32 %v759, %v797
        %v806 = vmul.f32 %v761, %v798
        %v807 = vmul.f32 %v763, %v799
        %v808 = vmul.f32 %v765, %v800
        %v809 = vmul.f32 %v767, %v801
        %v810 = vmul.f32 %v769, %v802
        %v811 = vmul.f32 %v771, %v803
        %812 = vst.msk [vmem:[%s378] sm:$0xff] %vm521, %v804
        %813 = vst.msk [vmem:[%s378 + $0x8] sm:$0xff] %vm521, %v805
        %814 = vst.msk [vmem:[%s378 + $0x10] sm:$0xff] %vm521, %v806
        %815 = vst.msk [vmem:[%s378 + $0x18] sm:$0xff] %vm521, %v807
        %816 = vst.msk [vmem:[%s378 + $0x20] sm:$0xff] %vm521, %v808
        %817 = vst.msk [vmem:[%s378 + $0x28] sm:$0xff] %vm521, %v809
        %818 = vst.msk [vmem:[%s378 + $0x30] sm:$0xff] %vm521, %v810
        %819 = vst.msk [vmem:[%s378 + $0x38] sm:$0xff] %vm521, %v811
        %v820 = vpack.c.bf16 %v805, %v804
        %821 = vrot.lane.b32.xlu0 %v520, 64
        %v822 = vpop.permute.xlu0 %821
        %v825 = vsel %vm521, %v820, 0
        %827 = vmatprep.subr.bf16.mxu0 0
        %828 = vmatpush1.bf16.msra.mxu0 %v822
        %829 = vmatprep.subr.bf16.mxu0 0
        %830 = vmatpush1.bf16.msra.mxu0 0
        %831 = vmatprep.subr.bf16.mxu0 0
        %832 = vmatpush1.bf16.msra.mxu0 0
        %833 = vmatprep.subr.bf16.mxu0 0
        %834 = vmatpush1.bf16.msra.mxu0 0
        %835 = vmatprep.subr.bf16.mxu0 0
        %836 = vmatpush1.bf16.msra.mxu0 0
        %837 = vmatprep.subr.bf16.mxu0 0
        %838 = vmatpush1.bf16.msra.mxu0 0
        %839 = vmatprep.subr.bf16.mxu0 0
        %840 = vmatpush1.bf16.msra.mxu0 0
        %841 = vmatprep.subr.bf16.mxu0 0
        %842 = vmatpush1.bf16.msra.mxu0 0
        %843 = vmatprep.subr.bf16.mxu0 0
        %844 = vmatpush1.bf16.msra.mxu0 0
        %845 = vmatprep.subr.bf16.mxu0 0
        %846 = vmatpush1.bf16.msra.mxu0 0
        %847 = vmatprep.subr.bf16.mxu0 0
        %848 = vmatpush1.bf16.msra.mxu0 0
        %849 = vmatprep.subr.bf16.mxu0 0
        %850 = vmatpush1.bf16.msra.mxu0 0
        %851 = vmatprep.subr.bf16.mxu0 0
        %852 = vmatpush1.bf16.msra.mxu0 0
        %853 = vmatprep.subr.bf16.mxu0 0
        %854 = vmatpush1.bf16.msra.mxu0 0
        %855 = vmatprep.subr.bf16.mxu0 0
        %856 = vmatpush1.bf16.msra.mxu0 0
        %857 = vmatprep.subr.bf16.mxu0 0
        %858 = vmatpush1.bf16.msra.mxu0 0
        %859 = vmatprep.mubr.bf16.mxu0 0
        %860 = vmatmul.mubr.bf16.gmra.mrb[0].mxu0 %v825
        %v861 = vpop.f32.mrb[0].mxu0
        %v862 = vadd.f32 0.0, %v861
        %v863 = vpop.f32.mrb[0].mxu0
        %v864 = vpop.f32.mrb[0].mxu0
        %v865 = vadd.f32 0.0, %v864
        %v866 = vpop.f32.mrb[0].mxu0
        %867 = vdwg.mxu0
        %v868 = vpack.c.bf16 %v865, %v862
        %v869 = vld [vmem:[#allocation8] sm:$0xf]
        %v870 = vld [vmem:[#allocation8 + $0x4] sm:$0xf]
        %v871 = vpack.c.bf16 %v807, %v806
        %872 = vrot.lane.b32.xlu0 %v520, 48
        %v873 = vpop.permute.xlu0 %872
        %v876 = vsel %vm521, %v871, 0
        %878 = vmatprep.subr.bf16.mxu0 0
        %879 = vmatpush1.bf16.msra.mxu0 %v873
        %880 = vmatprep.subr.bf16.mxu0 0
        %881 = vmatpush1.bf16.msra.mxu0 0
        %882 = vmatprep.subr.bf16.mxu0 0
        %883 = vmatpush1.bf16.msra.mxu0 0
        %884 = vmatprep.subr.bf16.mxu0 0
        %885 = vmatpush1.bf16.msra.mxu0 0
        %886 = vmatprep.subr.bf16.mxu0 0
        %887 = vmatpush1.bf16.msra.mxu0 0
        %888 = vmatprep.subr.bf16.mxu0 0
        %889 = vmatpush1.bf16.msra.mxu0 0
        %890 = vmatprep.subr.bf16.mxu0 0
        %891 = vmatpush1.bf16.msra.mxu0 0
        %892 = vmatprep.subr.bf16.mxu0 0
        %893 = vmatpush1.bf16.msra.mxu0 0
        %894 = vmatprep.subr.bf16.mxu0 0
        %895 = vmatpush1.bf16.msra.mxu0 0
        %896 = vmatprep.subr.bf16.mxu0 0
        %897 = vmatpush1.bf16.msra.mxu0 0
        %898 = vmatprep.subr.bf16.mxu0 0
        %899 = vmatpush1.bf16.msra.mxu0 0
        %900 = vmatprep.subr.bf16.mxu0 0
        %901 = vmatpush1.bf16.msra.mxu0 0
        %902 = vmatprep.subr.bf16.mxu0 0
        %903 = vmatpush1.bf16.msra.mxu0 0
        %904 = vmatprep.subr.bf16.mxu0 0
        %905 = vmatpush1.bf16.msra.mxu0 0
        %906 = vmatprep.subr.bf16.mxu0 0
        %907 = vmatpush1.bf16.msra.mxu0 0
        %908 = vmatprep.subr.bf16.mxu0 0
        %909 = vmatpush1.bf16.msra.mxu0 0
        %910 = vmatprep.mubr.bf16.mxu0 0
        %911 = vmatmul.mubr.bf16.gmra.mrb[0].mxu0 %v876
        %v912 = vpop.f32.mrb[0].mxu0
        %v913 = vadd.f32 0.0, %v912
        %v914 = vpop.f32.mrb[0].mxu0
        %v915 = vpop.f32.mrb[0].mxu0
        %v916 = vadd.f32 0.0, %v915
        %v917 = vpop.f32.mrb[0].mxu0
        %918 = vdwg.mxu0
        %v919 = vpack.c.bf16 %v916, %v913
        %s920 = scalar_lea.vmem [#allocation8], 8
        %v921 = vld [vmem:[%s920] sm:$0xf]
        %v922 = vld [vmem:[%s920 + $0x4] sm:$0xf]
        %v925 = vunpack.c.l.b16 %v921
        %v926 = vunpack.c.l.b16 %v922
        %v927 = vpack.c.b16 %v926, %v925
        %v930 = vsel %vm521, %v919, 0
        %932 = vmatprep.subr.bf16.mxu0 0
        %933 = vmatpush1.bf16.msra.mxu0 %v927
        %934 = vmatprep.subr.bf16.mxu0 0
        %935 = vmatpush1.bf16.msra.mxu0 0
        %936 = vmatprep.subr.bf16.mxu0 0
        %937 = vmatpush1.bf16.msra.mxu0 0
        %938 = vmatprep.subr.bf16.mxu0 0
        %939 = vmatpush1.bf16.msra.mxu0 0
        %940 = vmatprep.subr.bf16.mxu0 0
        %941 = vmatpush1.bf16.msra.mxu0 0
        %942 = vmatprep.subr.bf16.mxu0 0
        %943 = vmatpush1.bf16.msra.mxu0 0
        %944 = vmatprep.subr.bf16.mxu0 0
        %945 = vmatpush1.bf16.msra.mxu0 0
        %946 = vmatprep.subr.bf16.mxu0 0
        %947 = vmatpush1.bf16.msra.mxu0 0
        %948 = vmatprep.subr.bf16.mxu0 0
        %949 = vmatpush1.bf16.msra.mxu0 0
        %950 = vmatprep.subr.bf16.mxu0 0
        %951 = vmatpush1.bf16.msra.mxu0 0
        %952 = vmatprep.subr.bf16.mxu0 0
        %953 = vmatpush1.bf16.msra.mxu0 0
        %954 = vmatprep.subr.bf16.mxu0 0
        %955 = vmatpush1.bf16.msra.mxu0 0
        %956 = vmatprep.subr.bf16.mxu0 0
        %957 = vmatpush1.bf16.msra.mxu0 0
        %958 = vmatprep.subr.bf16.mxu0 0
        %959 = vmatpush1.bf16.msra.mxu0 0
        %960 = vmatprep.subr.bf16.mxu0 0
        %961 = vmatpush1.bf16.msra.mxu0 0
        %962 = vmatprep.subr.bf16.mxu0 0
        %963 = vmatpush1.bf16.msra.mxu0 0
        %964 = vmatprep.mubr.bf16.mxu0 0
        %965 = vmatmul.mubr.bf16.gmra.mrb[0].mxu0 %v930
        %v966 = vpop.f32.mrb[0].mxu0
        %v967 = vadd.f32 0.0, %v966
        %v968 = vpop.f32.mrb[0].mxu0
        %v969 = vpop.f32.mrb[0].mxu0
        %v970 = vadd.f32 0.0, %v969
        %v971 = vpop.f32.mrb[0].mxu0
        %972 = vdwg.mxu0
        %v975 = vunpack.c.l.b16 %v869
        %v976 = vunpack.c.l.b16 %v870
        %v977 = vpack.c.b16 %v976, %v975
        %v980 = vsel %vm521, %v868, 0
        %982 = vmatprep.subr.bf16.mxu0 0
        %983 = vmatpush1.bf16.msra.mxu0 %v977
        %984 = vmatprep.subr.bf16.mxu0 0
        %985 = vmatpush1.bf16.msra.mxu0 0
        %986 = vmatprep.subr.bf16.mxu0 0
        %987 = vmatpush1.bf16.msra.mxu0 0
        %988 = vmatprep.subr.bf16.mxu0 0
        %989 = vmatpush1.bf16.msra.mxu0 0
        %990 = vmatprep.subr.bf16.mxu0 0
        %991 = vmatpush1.bf16.msra.mxu0 0
        %992 = vmatprep.subr.bf16.mxu0 0
        %993 = vmatpush1.bf16.msra.mxu0 0
        %994 = vmatprep.subr.bf16.mxu0 0
        %995 = vmatpush1.bf16.msra.mxu0 0
        %996 = vmatprep.subr.bf16.mxu0 0
        %997 = vmatpush1.bf16.msra.mxu0 0
        %998 = vmatprep.subr.bf16.mxu0 0
        %999 = vmatpush1.bf16.msra.mxu0 0
        %1000 = vmatprep.subr.bf16.mxu0 0
        %1001 = vmatpush1.bf16.msra.mxu0 0
        %1002 = vmatprep.subr.bf16.mxu0 0
        %1003 = vmatpush1.bf16.msra.mxu0 0
        %1004 = vmatprep.subr.bf16.mxu0 0
        %1005 = vmatpush1.bf16.msra.mxu0 0
        %1006 = vmatprep.subr.bf16.mxu0 0
        %1007 = vmatpush1.bf16.msra.mxu0 0
        %1008 = vmatprep.subr.bf16.mxu0 0
        %1009 = vmatpush1.bf16.msra.mxu0 0
        %1010 = vmatprep.subr.bf16.mxu0 0
        %1011 = vmatpush1.bf16.msra.mxu0 0
        %1012 = vmatprep.subr.bf16.mxu0 0
        %1013 = vmatpush1.bf16.msra.mxu0 0
        %1014 = vmatprep.mubr.bf16.mxu0 0
        %1015 = vmatmul.mubr.bf16.gmra.mrb[0].mxu0 %v980
        %v1016 = vpop.f32.mrb[0].mxu0
        %v1017 = vadd.f32 %v967, %v1016
        %v1018 = vpop.f32.mrb[0].mxu0
        %v1019 = vpop.f32.mrb[0].mxu0
        %v1020 = vadd.f32 %v970, %v1019
        %v1021 = vpop.f32.mrb[0].mxu0
        %1022 = vdwg.mxu0
        %v1023 = vpack.c.bf16 %v809, %v808
        %1024 = vrot.lane.b32.xlu0 %v520, 32
        %v1025 = vpop.permute.xlu0 %1024
        %v1028 = vsel %vm521, %v1023, 0
        %1030 = vmatprep.subr.bf16.mxu0 0
        %1031 = vmatpush1.bf16.msra.mxu0 %v1025
        %1032 = vmatprep.subr.bf16.mxu0 0
        %1033 = vmatpush1.bf16.msra.mxu0 0
        %1034 = vmatprep.subr.bf16.mxu0 0
        %1035 = vmatpush1.bf16.msra.mxu0 0
        %1036 = vmatprep.subr.bf16.mxu0 0
        %1037 = vmatpush1.bf16.msra.mxu0 0
        %1038 = vmatprep.subr.bf16.mxu0 0
        %1039 = vmatpush1.bf16.msra.mxu0 0
        %1040 = vmatprep.subr.bf16.mxu0 0
        %1041 = vmatpush1.bf16.msra.mxu0 0
        %1042 = vmatprep.subr.bf16.mxu0 0
        %1043 = vmatpush1.bf16.msra.mxu0 0
        %1044 = vmatprep.subr.bf16.mxu0 0
        %1045 = vmatpush1.bf16.msra.mxu0 0
        %1046 = vmatprep.subr.bf16.mxu0 0
        %1047 = vmatpush1.bf16.msra.mxu0 0
        %1048 = vmatprep.subr.bf16.mxu0 0
        %1049 = vmatpush1.bf16.msra.mxu0 0
        %1050 = vmatprep.subr.bf16.mxu0 0
        %1051 = vmatpush1.bf16.msra.mxu0 0
        %1052 = vmatprep.subr.bf16.mxu0 0
        %1053 = vmatpush1.bf16.msra.mxu0 0
        %1054 = vmatprep.subr.bf16.mxu0 0
        %1055 = vmatpush1.bf16.msra.mxu0 0
        %1056 = vmatprep.subr.bf16.mxu0 0
        %1057 = vmatpush1.bf16.msra.mxu0 0
        %1058 = vmatprep.subr.bf16.mxu0 0
        %1059 = vmatpush1.bf16.msra.mxu0 0
        %1060 = vmatprep.subr.bf16.mxu0 0
        %1061 = vmatpush1.bf16.msra.mxu0 0
        %1062 = vmatprep.mubr.bf16.mxu0 0
        %1063 = vmatmul.mubr.bf16.gmra.mrb[0].mxu0 %v1028
        %v1064 = vpop.f32.mrb[0].mxu0
        %v1065 = vadd.f32 0.0, %v1064
        %v1066 = vpop.f32.mrb[0].mxu0
        %v1067 = vpop.f32.mrb[0].mxu0
        %v1068 = vadd.f32 0.0, %v1067
        %v1069 = vpop.f32.mrb[0].mxu0
        %1070 = vdwg.mxu0
        %v1071 = vpack.c.bf16 %v1068, %v1065
        %s1072 = scalar_lea.vmem [#allocation8], 16
        %v1073 = vld [vmem:[%s1072] sm:$0xf]
        %v1074 = vld [vmem:[%s1072 + $0x4] sm:$0xf]
        %v1077 = vunpack.c.l.b16 %v1073
        %v1078 = vunpack.c.l.b16 %v1074
        %v1079 = vpack.c.b16 %v1078, %v1077
        %v1082 = vsel %vm521, %v1071, 0
        %1084 = vmatprep.subr.bf16.mxu0 0
        %1085 = vmatpush1.bf16.msra.mxu0 %v1079
        %1086 = vmatprep.subr.bf16.mxu0 0
        %1087 = vmatpush1.bf16.msra.mxu0 0
        %1088 = vmatprep.subr.bf16.mxu0 0
        %1089 = vmatpush1.bf16.msra.mxu0 0
        %1090 = vmatprep.subr.bf16.mxu0 0
        %1091 = vmatpush1.bf16.msra.mxu0 0
        %1092 = vmatprep.subr.bf16.mxu0 0
        %1093 = vmatpush1.bf16.msra.mxu0 0
        %1094 = vmatprep.subr.bf16.mxu0 0
        %1095 = vmatpush1.bf16.msra.mxu0 0
        %1096 = vmatprep.subr.bf16.mxu0 0
        %1097 = vmatpush1.bf16.msra.mxu0 0
        %1098 = vmatprep.subr.bf16.mxu0 0
        %1099 = vmatpush1.bf16.msra.mxu0 0
        %1100 = vmatprep.subr.bf16.mxu0 0
        %1101 = vmatpush1.bf16.msra.mxu0 0
        %1102 = vmatprep.subr.bf16.mxu0 0
        %1103 = vmatpush1.bf16.msra.mxu0 0
        %1104 = vmatprep.subr.bf16.mxu0 0
        %1105 = vmatpush1.bf16.msra.mxu0 0
        %1106 = vmatprep.subr.bf16.mxu0 0
        %1107 = vmatpush1.bf16.msra.mxu0 0
        %1108 = vmatprep.subr.bf16.mxu0 0
        %1109 = vmatpush1.bf16.msra.mxu0 0
        %1110 = vmatprep.subr.bf16.mxu0 0
        %1111 = vmatpush1.bf16.msra.mxu0 0
        %1112 = vmatprep.subr.bf16.mxu0 0
        %1113 = vmatpush1.bf16.msra.mxu0 0
        %1114 = vmatprep.subr.bf16.mxu0 0
        %1115 = vmatpush1.bf16.msra.mxu0 0
        %1116 = vmatprep.mubr.bf16.mxu0 0
        %1117 = vmatmul.mubr.bf16.gmra.mrb[0].mxu0 %v1082
        %v1118 = vpop.f32.mrb[0].mxu0
        %v1119 = vadd.f32 0.0, %v1118
        %v1120 = vpop.f32.mrb[0].mxu0
        %v1121 = vpop.f32.mrb[0].mxu0
        %v1122 = vadd.f32 0.0, %v1121
        %v1123 = vpop.f32.mrb[0].mxu0
        %1124 = vdwg.mxu0
        %v1125 = vadd.f32 %v1017, %v1119
        %v1126 = vadd.f32 %v1020, %v1122
        %v1127 = vpack.c.bf16 %v811, %v810
        %1128 = vrot.lane.b32.xlu0 %v520, 16
        %v1129 = vpop.permute.xlu0 %1128
        %v1132 = vsel %vm521, %v1127, 0
        %1134 = vmatprep.subr.bf16.mxu0 0
        %1135 = vmatpush1.bf16.msra.mxu0 %v1129
        %1136 = vmatprep.subr.bf16.mxu0 0
        %1137 = vmatpush1.bf16.msra.mxu0 0
        %1138 = vmatprep.subr.bf16.mxu0 0
        %1139 = vmatpush1.bf16.msra.mxu0 0
        %1140 = vmatprep.subr.bf16.mxu0 0
        %1141 = vmatpush1.bf16.msra.mxu0 0
        %1142 = vmatprep.subr.bf16.mxu0 0
        %1143 = vmatpush1.bf16.msra.mxu0 0
        %1144 = vmatprep.subr.bf16.mxu0 0
        %1145 = vmatpush1.bf16.msra.mxu0 0
        %1146 = vmatprep.subr.bf16.mxu0 0
        %1147 = vmatpush1.bf16.msra.mxu0 0
        %1148 = vmatprep.subr.bf16.mxu0 0
        %1149 = vmatpush1.bf16.msra.mxu0 0
        %1150 = vmatprep.subr.bf16.mxu0 0
        %1151 = vmatpush1.bf16.msra.mxu0 0
        %1152 = vmatprep.subr.bf16.mxu0 0
        %1153 = vmatpush1.bf16.msra.mxu0 0
        %1154 = vmatprep.subr.bf16.mxu0 0
        %1155 = vmatpush1.bf16.msra.mxu0 0
        %1156 = vmatprep.subr.bf16.mxu0 0
        %1157 = vmatpush1.bf16.msra.mxu0 0
        %1158 = vmatprep.subr.bf16.mxu0 0
        %1159 = vmatpush1.bf16.msra.mxu0 0
        %1160 = vmatprep.subr.bf16.mxu0 0
        %1161 = vmatpush1.bf16.msra.mxu0 0
        %1162 = vmatprep.subr.bf16.mxu0 0
        %1163 = vmatpush1.bf16.msra.mxu0 0
        %1164 = vmatprep.subr.bf16.mxu0 0
        %1165 = vmatpush1.bf16.msra.mxu0 0
        %1166 = vmatprep.mubr.bf16.mxu0 0
        %1167 = vmatmul.mubr.bf16.gmra.mrb[0].mxu0 %v1132
        %v1168 = vpop.f32.mrb[0].mxu0
        %v1169 = vadd.f32 0.0, %v1168
        %v1170 = vpop.f32.mrb[0].mxu0
        %v1171 = vpop.f32.mrb[0].mxu0
        %v1172 = vadd.f32 0.0, %v1171
        %v1173 = vpop.f32.mrb[0].mxu0
        %1174 = vdwg.mxu0
        %v1175 = vpack.c.bf16 %v1172, %v1169
        %s1176 = scalar_lea.vmem [#allocation8], 24
        %v1177 = vld [vmem:[%s1176] sm:$0xf]
        %v1178 = vld [vmem:[%s1176 + $0x4] sm:$0xf]
        %v1181 = vunpack.c.l.b16 %v1177
        %v1182 = vunpack.c.l.b16 %v1178
        %v1183 = vpack.c.b16 %v1182, %v1181
        %v1186 = vsel %vm521, %v1175, 0
        %1188 = vmatprep.subr.bf16.mxu0 0
        %1189 = vmatpush1.bf16.msra.mxu0 %v1183
        %1190 = vmatprep.subr.bf16.mxu0 0
        %1191 = vmatpush1.bf16.msra.mxu0 0
        %1192 = vmatprep.subr.bf16.mxu0 0
        %1193 = vmatpush1.bf16.msra.mxu0 0
        %1194 = vmatprep.subr.bf16.mxu0 0
        %1195 = vmatpush1.bf16.msra.mxu0 0
        %1196 = vmatprep.subr.bf16.mxu0 0
        %1197 = vmatpush1.bf16.msra.mxu0 0
        %1198 = vmatprep.subr.bf16.mxu0 0
        %1199 = vmatpush1.bf16.msra.mxu0 0
        %1200 = vmatprep.subr.bf16.mxu0 0
        %1201 = vmatpush1.bf16.msra.mxu0 0
        %1202 = vmatprep.subr.bf16.mxu0 0
        %1203 = vmatpush1.bf16.msra.mxu0 0
        %1204 = vmatprep.subr.bf16.mxu0 0
        %1205 = vmatpush1.bf16.msra.mxu0 0
        %1206 = vmatprep.subr.bf16.mxu0 0
        %1207 = vmatpush1.bf16.msra.mxu0 0
        %1208 = vmatprep.subr.bf16.mxu0 0
        %1209 = vmatpush1.bf16.msra.mxu0 0
        %1210 = vmatprep.subr.bf16.mxu0 0
        %1211 = vmatpush1.bf16.msra.mxu0 0
        %1212 = vmatprep.subr.bf16.mxu0 0
        %1213 = vmatpush1.bf16.msra.mxu0 0
        %1214 = vmatprep.subr.bf16.mxu0 0
        %1215 = vmatpush1.bf16.msra.mxu0 0
        %1216 = vmatprep.subr.bf16.mxu0 0
        %1217 = vmatpush1.bf16.msra.mxu0 0
        %1218 = vmatprep.subr.bf16.mxu0 0
        %1219 = vmatpush1.bf16.msra.mxu0 0
        %1220 = vmatprep.mubr.bf16.mxu0 0
        %1221 = vmatmul.mubr.bf16.gmra.mrb[0].mxu0 %v1186
        %v1222 = vpop.f32.mrb[0].mxu0
        %v1223 = vadd.f32 0.0, %v1222
        %v1224 = vpop.f32.mrb[0].mxu0
        %v1225 = vpop.f32.mrb[0].mxu0
        %v1226 = vadd.f32 0.0, %v1225
        %v1227 = vpop.f32.mrb[0].mxu0
        %1228 = vdwg.mxu0
        %v1229 = vadd.f32 %v1125, %v1223
        %v1230 = vadd.f32 %v1126, %v1226
        %v1231 = vld [vmem:[%s6] sm:$0x1]
        %v1233 = vlaneseq
        %v1234 = vshrl.u32 %v1233, 7
        %v1235 = vsub.s32 0, %v1234
        %v1236 = vrot.slane %v1231, %v1235
        %v1238 = vadd.f32 %v1229, %v1236
        %v1239 = vadd.f32 %v1230, %v1236
        %v1240 = vunpack.c.l.bf16 %v380
        %v1241 = vunpack.c.l.bf16 %v381
        %v1242 = vadd.f32 %v1238, %v1240
        %v1243 = vadd.f32 %v1239, %v1241
        %v1244 = vsel %vm410, %v1242, 0.0
        %1245 = vadd.xlane.f32.xlu0 %v1244
        %v1246 = vpop.xlane.xlu0 %1245
        %v1247 = vsel %vm410, %v1243, 0.0
        %1248 = vadd.xlane.f32.xlu0 %v1247
        %v1249 = vpop.xlane.xlu0 %1248
        %v1250 = vrcp.pop 32.0
        %v1251 = vmul.f32 %v1246, %v1250
        %v1252 = vmul.f32 %v1249, %v1250
        %v1253 = vmul.f32 %v1242, %v1242
        %v1254 = vmul.f32 %v1243, %v1243
        %v1255 = vsel %vm410, %v1253, 0.0
        %1256 = vadd.xlane.f32.xlu0 %v1255
        %v1257 = vpop.xlane.xlu0 %1256
        %v1258 = vsel %vm410, %v1254, 0.0
        %1259 = vadd.xlane.f32.xlu0 %v1258
        %v1260 = vpop.xlane.xlu0 %1259
        %v1261 = vmul.f32 %v1257, %v1250
        %v1262 = vmul.f32 %v1260, %v1250
        %v1263 = vmul.f32 %v1251, %v1251
        %v1264 = vmul.f32 %v1252, %v1252
        %v1265 = vsub.f32 %v1261, %v1263
        %v1266 = vsub.f32 %v1262, %v1264
        %v1267 = vsub.f32 %v1242, %v1251
        %v1268 = vsub.f32 %v1243, %v1252
        %v1269 = vadd.f32 %v1265, 1e-05
        %v1270 = vadd.f32 %v1266, 1e-05
        %v1271 = vrsqrt.pop %v1269
        %v1272 = vrsqrt.pop %v1270
        %v1273 = vmul.f32 %v1267, %v1271
        %v1274 = vmul.f32 %v1268, %v1272
        %v1275 = vpack.c.bf16 %v1274, %v1273
        %v1277 = vunpack.c.l.b16 %v1275
        %v1278 = vunpack.c.h.b16 %v1275
        %v1279 = vpack.c.b16 %v1277, %v1277
        %v1280 = vpack.c.b16 %v1278, %v1278
        %vm1283 = vcmask 257024
        %1284 = vst.msk [vmem:[%s371] sm:$0xf] %vm1283, %v1279
        %1285 = vst.msk [vmem:[%s371 + $0x4] sm:$0xf] %vm1283, %v1280
        %s1286 = sand.u32 %s191, 1
        %s1287 = scalar_lea.sflag [#allocation4], %s1286
        %s1288 = sand.u32 %s191, 1
        %s1289 = smul.addr %s1288, 8
        %s1290 = scalar_lea.vmem [#allocation10], %s1289
        %s1291 = sand.u32 %s217, 1
        %s1292 = scalar_lea.sflag [#allocation12], %s1291
        %s1293 = sand.u32 %s217, 1
        %s1294 = smul.addr %s1293, 64
        %s1295 = scalar_lea.vmem [#allocation11], %s1294
        // Predicated region
        $region65: #{tpu_custom_call.1} parent=47 // pred_check
          %p1296 = pneg %p201
        $region66: #{tpu_custom_call.1} parent=47 // pred_check_branch
          %1298 = sbr.rel (%p1296) target = $region68
        $region67: #{tpu_custom_call.1} parent=47 // pred_region
          %s1300 = ssub.s32 128, 128
          %1301 = vsyncadd %s1287, %s1300
          %s1302 = smul.addr %s31, 2
          %s1303 = smul.addr %s1302, 64
          %s1304 = scalar_lea.hbm %s7, %s1303
          %s1305 = sshll.u32 %s1290, 4
          %s1306 = int_to_ptr.vmem [resolvable:$true] %s1305
          %1311 = dma.vmem_to_hbm [thread:$0]  %s1306, 128, %s1304, %s1287, 64, 64, 4
        $region68: #{tpu_custom_call.1} parent=47 // pred_fallthru
          _
        // Predicated region
        $region69: #{tpu_custom_call.1} parent=47 // pred_check
          %p1312 = pneg %p227
        $region70: #{tpu_custom_call.1} parent=47 // pred_check_branch
          %1314 = sbr.rel (%p1312) target = $region72
        $region71: #{tpu_custom_call.1} parent=47 // pred_region
          %s1316 = ssub.s32 1024, 1024
          %1317 = vsyncadd %s1292, %s1316
          %s1318 = smul.addr %s31, 8
          %s1319 = smul.addr %s1318, 128
          %s1320 = scalar_lea.hbm %s8, %s1319
          %s1321 = sshll.u32 %s1295, 4
          %s1322 = int_to_ptr.vmem [resolvable:$true] %s1321
          %1327 = dma.vmem_to_hbm [thread:$0]  %s1322, 1024, %s1320, %s1292, 128, 128, 8
        $region72: #{tpu_custom_call.1} parent=47 // pred_fallthru
          _
      $region48: #{tpu_custom_call.1} parent=5 // pred_fallthru
        _
      %p1328 = scmp.le.s32.totalorder 2, %s26
      // Predicated region
      $region73: #{tpu_custom_call.1} parent=5 // pred_check
        %p1329 = pneg %p1328
      $region74: #{tpu_custom_call.1} parent=5 // pred_check_branch
        %1331 = sbr.rel (%p1329) target = $region76
      $region75: #{tpu_custom_call.1} parent=5 // pred_region
        %s1332 = ssub.s32 %s26, 2
        // Predicated region
        $region77: #{tpu_custom_call.1} parent=75 // pred_check
          %p1333 = pneg %p207
        $region78: #{tpu_custom_call.1} parent=75 // pred_check_branch
          %1335 = sbr.rel (%p1333) target = $region80
        $region79: #{tpu_custom_call.1} parent=75 // pred_region
          %s1336 = sand.u32 %s192, 1
          %s1337 = scalar_lea.sflag [#allocation4], %s1336
          %s1338 = sand.u32 %s192, 1
          %s1339 = smul.addr %s1338, 8
          %s1340 = scalar_lea.vmem [#allocation10], %s1339
          %1341 = dma.done %s1337, 128
        $region80: #{tpu_custom_call.1} parent=75 // pred_fallthru
          _
        // Predicated region
        $region81: #{tpu_custom_call.1} parent=75 // pred_check
          %p1342 = pneg %p233
        $region82: #{tpu_custom_call.1} parent=75 // pred_check_branch
          %1344 = sbr.rel (%p1342) target = $region84
        $region83: #{tpu_custom_call.1} parent=75 // pred_region
          %s1345 = sand.u32 %s218, 1
          %s1346 = scalar_lea.sflag [#allocation12], %s1345
          %s1347 = sand.u32 %s218, 1
          %s1348 = smul.addr %s1347, 64
          %s1349 = scalar_lea.vmem [#allocation11], %s1348
          %1350 = dma.done %s1346, 1024
        $region84: #{tpu_custom_call.1} parent=75 // pred_fallthru
          _
      $region76: #{tpu_custom_call.1} parent=5 // pred_fallthru
        _
    $region6: #{tpu_custom_call.1} parent=1 // loop_footer
      %s30 = sadd.s32 1, %s26
    $region7: #{tpu_custom_call.1} parent=1 // loop_footer_branch
      %25 = sbr.rel target = $region3
    $region8: #{tpu_custom_call.1} parent=1 // loop_exit
      _
    %1351 = vsyncpa [#allocation3], 1
    %s1352 = scalar_lea.sflag [#allocation3], 1
    %1353 = vsyncpa %s1352, 1
    %1354 = vsyncpa [#allocation6], 1
    %1355 = vsyncpa [#allocation9], 1
    %1356 = vsyncpa [#allocation4], 1
    %s1357 = scalar_lea.sflag [#allocation4], 1
    %1358 = vsyncpa %s1357, 1
    %1359 = vsyncpa [#allocation12], 1
    %s1360 = scalar_lea.sflag [#allocation12], 1
    %1361 = vsyncpa %s1360, 1

</llo_original>
